<compile_context>
chip_gen: v7x
topology: tpu7x:2x2x1
jax: 0.10.0
libtpu: 0.0.40
codegen_flags: <defaults>
</compile_context>

<pallas_src>
import jax
import jax.numpy as jnp
from jax import lax
from jax.experimental import pallas as pl
from jax.experimental.pallas import tpu as pltpu


# ----------------------------- Pallas kernel ------------------------------ #

def spatial_att_kernel(enc_ref, ld_ref, w9_ref, bconv_ref, rhs_ref, rwt_ref,
                       scale_ref, bias_ref, out_ref, att_ref):
    # enc_ref  : (1, TC, H*W)   encoder features, flattened spatial (lane dense)
    # ld_ref   : (1, h, w, C)   low-res decoder features (channels-last)
    # w9_ref   : (9, C)         conv weight, tap-major (k = ky*3 + kx)
    # bconv_ref: (1, 1)         conv bias
    # rhs_ref  : (3, H, h)      row-interp matrices, vertical tap shift folded
    # rwt_ref  : (3, w, W)      (col-interp matrices, horizontal shift folded)^T
    # scale_ref: (TC, 1)        folded BatchNorm scale (gamma / sqrt(var+eps))
    # bias_ref : (TC, 1)        folded BatchNorm bias
    # out_ref  : (1, TC, H*W)
    # att_ref  : (1, H*W)       VMEM scratch: flat sigmoid attention map
    H = rhs_ref.shape[1]
    W = rwt_ref.shape[2]
    w_lo = rwt_ref.shape[1]

    @pl.when(pl.program_id(1) == 0)
    def _compute_attention():
        ld = ld_ref[0]                                    # (h, w, C)
        logit = jnp.zeros((H, W), jnp.float32)
        for kx in range(3):
            m = jnp.zeros((H, w_lo), jnp.float32)
            for ky in range(3):
                k = ky * 3 + kx
                # 64 -> 1 channel contraction at low resolution: (h, w)
                t = jnp.sum(ld * w9_ref[k][None, None, :], axis=-1)
                # vertical bilinear interp + vertical conv-tap shift
                m = m + jnp.dot(rhs_ref[ky], t,
                                preferred_element_type=jnp.float32)
            # horizontal bilinear interp + horizontal conv-tap shift
            logit = logit + jnp.dot(m, rwt_ref[kx],
                                    preferred_element_type=jnp.float32)
        att = 1.0 / (1.0 + jnp.exp(-(logit + bconv_ref[0, 0])))   # sigmoid
        # Lay the (H, W) map out lane-flat so it broadcasts against (TC, H*W)
        # without an in-kernel lane<->sublane reshape.
        for y in range(H):
            att_ref[:, y * W:(y + 1) * W] = att[y:y + 1, :]

    # BatchNorm (inference, folded) + ReLU + spatial attention gate.
    x = enc_ref[0]                                                  # (TC, H*W)
    y = jnp.maximum(x * scale_ref[...] + bias_ref[...], 0.0)
    out_ref[0] = y * att_ref[...]


# ------------------------- wrapper-side operators -------------------------- #

def _interp_matrix(out_size, in_size):
    """(out_size, in_size) matrix for 1-D bilinear interpolation with the
    PyTorch `align_corners=False` convention (half-pixel centers, edge clamp)."""
    i = jnp.arange(out_size, dtype=jnp.float32)
    src = jnp.clip((i + 0.5) * (in_size / out_size) - 0.5, 0.0, in_size - 1.0)
    i0 = jnp.floor(src).astype(jnp.int32)
    i1 = jnp.minimum(i0 + 1, in_size - 1)
    f = src - i0.astype(jnp.float32)
    rows = jnp.arange(out_size)
    R = jnp.zeros((out_size, in_size), jnp.float32)
    R = R.at[rows, i0].add(1.0 - f)
    R = R.at[rows, i1].add(f)
    return R


def _shift_rows(R, off):
    """result[i, :] = R[i + off, :] (zero rows outside) — folds one spatial
    tap of the zero-padded 3x3 conv into the interpolation matrix."""
    if off == 0:
        return R
    z = jnp.zeros((abs(off), R.shape[1]), R.dtype)
    if off > 0:
        return jnp.concatenate([R[off:], z], axis=0)
    return jnp.concatenate([z, R[:off]], axis=0)


def spatial_att_pallas(the_enc, last_dec, conv_w, conv_b,
                       bn_gamma, bn_beta, bn_mean, bn_var, eps=1e-5):
    """the_enc: (N, 64, H, W); last_dec: (N, 64, h, w). Returns (N, 64, H, W)."""
    N, C, H, W = the_enc.shape
    Nd, Cd, h, w = last_dec.shape
    assert Nd == N and Cd == C
    HW = H * W
    TC = 32 if C % 32 == 0 else C            # channel tile per grid step
    assert C % TC == 0

    # Fold BatchNorm (inference mode) into per-channel scale/bias.
    inv_std = 1.0 / jnp.sqrt(bn_var.astype(jnp.float32) + eps)
    scale = (bn_gamma * inv_std).reshape(C, 1).astype(jnp.float32)
    bias = (bn_beta - bn_mean * bn_gamma * inv_std).reshape(C, 1).astype(jnp.float32)

    # Conv weight (1, C, 3, 3) -> (9, C), tap-major; bias -> (1, 1).
    w9 = jnp.transpose(conv_w[0], (1, 2, 0)).reshape(9, C).astype(jnp.float32)
    bconv = conv_b.reshape(1, 1).astype(jnp.float32)

    # Bilinear interpolation matrices with the conv's 3x3 taps folded in.
    Rh = _interp_matrix(H, h)
    Rw = _interp_matrix(W, w)
    rhs = jnp.stack([_shift_rows(Rh, ky - 1) for ky in range(3)])        # (3,H,h)
    rwt = jnp.stack([_shift_rows(Rw, kx - 1).T for kx in range(3)])      # (3,w,W)

    # Free lane-dense view of the big tensor; tiny last_dec goes channels-last.
    enc_flat = the_enc.reshape(N, C, HW)
    ld_nhwc = jnp.transpose(last_dec, (0, 2, 3, 1))                      # (N,h,w,C)

    out_flat = pl.pallas_call(
        spatial_att_kernel,
        out_shape=jax.ShapeDtypeStruct((N, C, HW), jnp.float32),
        grid_spec=pltpu.PrefetchScalarGridSpec(
            num_scalar_prefetch=0,
            grid=(N, C // TC),
            in_specs=[
                pl.BlockSpec((1, TC, HW), lambda n, c: (n, c, 0)),
                pl.BlockSpec((1, h, w, C), lambda n, c: (n, 0, 0, 0)),
                pl.BlockSpec((9, C), lambda n, c: (0, 0)),
                pl.BlockSpec((1, 1), lambda n, c: (0, 0)),
                pl.BlockSpec((3, H, h), lambda n, c: (0, 0, 0)),
                pl.BlockSpec((3, w, W), lambda n, c: (0, 0, 0)),
                pl.BlockSpec((TC, 1), lambda n, c: (c, 0)),
                pl.BlockSpec((TC, 1), lambda n, c: (c, 0)),
            ],
            out_specs=pl.BlockSpec((1, TC, HW), lambda n, c: (n, c, 0)),
            scratch_shapes=[pltpu.VMEM((1, HW), jnp.float32)],
        ),
        compiler_params=pltpu.CompilerParams(
            dimension_semantics=("parallel", "arbitrary")),
    )(enc_flat, ld_nhwc, w9, bconv, rhs, rwt, scale, bias)

    return out_flat.reshape(N, C, H, W)


# ---------------------------- pure-JAX reference --------------------------- #

def _bilinear_resize_ref(x, H, W):
    """Bilinear (N, C, h, w) -> (N, C, H, W), PyTorch align_corners=False."""
    N, C, h, w = x.shape
    sy = jnp.clip((jnp.arange(H, dtype=jnp.float32) + 0.5) * (h / H) - 0.5,
                  0.0, h - 1.0)
    sx = jnp.clip((jnp.arange(W, dtype=jnp.float32) + 0.5) * (w / W) - 0.5,
                  0.0, w - 1.0)
    y0 = jnp.floor(sy).astype(jnp.int32)
    x0 = jnp.floor(sx).astype(jnp.int32)
    y1 = jnp.minimum(y0 + 1, h - 1)
    x1 = jnp.minimum(x0 + 1, w - 1)
    fy = (sy - y0.astype(jnp.float32)).reshape(1, 1, H, 1)
    fx = (sx - x0.astype(jnp.float32)).reshape(1, 1, 1, W)
    r0 = x[:, :, y0, :]
    r1 = x[:, :, y1, :]
    top = r0[:, :, :, x0] * (1.0 - fx) + r0[:, :, :, x1] * fx
    bot = r1[:, :, :, x0] * (1.0 - fx) + r1[:, :, :, x1] * fx
    return top * (1.0 - fy) + bot * fy


def spatial_att_reference(the_enc, last_dec, conv_w, conv_b,
                          bn_gamma, bn_beta, bn_mean, bn_var, eps=1e-5):
    N, C, H, W = the_enc.shape
    up = _bilinear_resize_ref(last_dec, H, W)
    logit = lax.conv_general_dilated(
        up, conv_w, window_strides=(1, 1), padding=((1, 1), (1, 1)),
        dimension_numbers=("NCHW", "OIHW", "NCHW")) + conv_b.reshape(1, 1, 1, 1)
    att = 1.0 / (1.0 + jnp.exp(-logit))                       # (N, 1, H, W)
    enc = (the_enc - bn_mean.reshape(1, C, 1, 1)) / jnp.sqrt(
        bn_var.reshape(1, C, 1, 1) + eps)
    enc = enc * bn_gamma.reshape(1, C, 1, 1) + bn_beta.reshape(1, C, 1, 1)
    enc = jnp.maximum(enc, 0.0)
    return enc * att


# ----------------------------------- test ---------------------------------- #

if __name__ == "__main__":
    key = jax.random.PRNGKey(0)
    ks = jax.random.split(key, 8)

    N, C, H, W = 2, 64, 16, 16     # module hardcodes 64 channels
    h, w = 8, 8                    # lower-resolution decoder feature map

    the_enc = jax.random.normal(ks[0], (N, C, H, W), jnp.float32)
    last_dec = jax.random.normal(ks[1], (N, C, h, w), jnp.float32)
    conv_w = 0.1 * jax.random.normal(ks[2], (1, C, 3, 3), jnp.float32)
    conv_b = 0.1 * jax.random.normal(ks[3], (1,), jnp.float32)
    bn_gamma = 1.0 + 0.1 * jax.random.normal(ks[4], (C,), jnp.float32)
    bn_beta = 0.1 * jax.random.normal(ks[5], (C,), jnp.float32)
    bn_mean = 0.1 * jax.random.normal(ks[6], (C,), jnp.float32)
    bn_var = 1.0 + 0.1 * jnp.abs(jax.random.normal(ks[7], (C,), jnp.float32))

    out = jax.block_until_ready(spatial_att_pallas(
        the_enc, last_dec, conv_w, conv_b, bn_gamma, bn_beta, bn_mean, bn_var))
    ref = jax.block_until_ready(spatial_att_reference(
        the_enc, last_dec, conv_w, conv_b, bn_gamma, bn_beta, bn_mean, bn_var))

    assert out.shape == (N, C, H, W), out.shape
    max_err = float(jnp.max(jnp.abs(out - ref)))
    assert jnp.allclose(out, ref, atol=1e-4, rtol=1e-4), max_err
    print("KERNEL_OK")
</pallas_src>

<mosaic_0001>
module attributes {stable_mosaic.version = 11 : i64} {
  func.func @spatial_att_kernel(%arg0: i32, %arg1: i32, %arg2: memref<1x32x256xf32, #tpu.memory_space<vmem>>, %arg3: memref<1x8x8x64xf32, #tpu.memory_space<vmem>>, %arg4: memref<9x64xf32, #tpu.memory_space<vmem>>, %arg5: memref<1x1xf32, #tpu.memory_space<vmem>>, %arg6: memref<3x16x8xf32, #tpu.memory_space<vmem>>, %arg7: memref<3x8x16xf32, #tpu.memory_space<vmem>>, %arg8: memref<32x1xf32, #tpu.memory_space<vmem>>, %arg9: memref<32x1xf32, #tpu.memory_space<vmem>>, %arg10: memref<1x32x256xf32, #tpu.memory_space<vmem>>, %arg11: memref<1x256xf32, #tpu.memory_space<vmem>>) attributes {dimension_semantics = [#tpu.dimension_semantics<parallel>, #tpu.dimension_semantics<arbitrary>], iteration_bounds = array<i64: 2, 2>, scalar_prefetch = 0 : i64, scratch_operands = 1 : i64, tpu.core_type = #tpu.core_type<tc>, window_params = [{transform_indices = @transform_0, window_bounds = array<i64: 1, 32, 256>}, {transform_indices = @transform_1, window_bounds = array<i64: 1, 8, 8, 64>}, {pipeline_mode = #tpu.pipeline_mode<synchronous>, transform_indices = @transform_2, window_bounds = array<i64: 9, 64>}, {pipeline_mode = #tpu.pipeline_mode<synchronous>, transform_indices = @transform_3, window_bounds = array<i64: 1, 1>}, {pipeline_mode = #tpu.pipeline_mode<synchronous>, transform_indices = @transform_4, window_bounds = array<i64: 3, 16, 8>}, {pipeline_mode = #tpu.pipeline_mode<synchronous>, transform_indices = @transform_5, window_bounds = array<i64: 3, 8, 16>}, {transform_indices = @transform_6, window_bounds = array<i64: 32, 1>}, {transform_indices = @transform_7, window_bounds = array<i64: 32, 1>}, {transform_indices = @transform_8, window_bounds = array<i64: 1, 32, 256>}]} {
    %c0_i32 = arith.constant 0 : i32
    %0 = arith.cmpi eq, %arg1, %c0_i32 : i32
    %1 = arith.extui %0 : i1 to i32
    %c0_i32_0 = arith.constant 0 : i32
    %2 = arith.cmpi ne, %1, %c0_i32_0 : i32
    scf.if %2 {
      %c0_12 = arith.constant 0 : index
      %c0_13 = arith.constant 0 : index
      %c0_14 = arith.constant 0 : index
      %c0_15 = arith.constant 0 : index
      %19 = vector.load %arg3[%c0_12, %c0_13, %c0_14, %c0_15] : memref<1x8x8x64xf32, #tpu.memory_space<vmem>>, vector<1x8x8x64xf32>
      %20 = vector.shape_cast %19 : vector<1x8x8x64xf32> to vector<8x8x64xf32>
      %cst_16 = arith.constant 0.000000e+00 : f32
      %21 = vector.broadcast %cst_16 : f32 to vector<16x16xf32>
      %cst_17 = arith.constant 0.000000e+00 : f32
      %22 = vector.broadcast %cst_17 : f32 to vector<16x8xf32>
      %c0_18 = arith.constant 0 : index
      %c0_19 = arith.constant 0 : index
      %23 = vector.load %arg4[%c0_18, %c0_19] : memref<9x64xf32, #tpu.memory_space<vmem>>, vector<1x64xf32>
      %24 = vector.shape_cast %23 : vector<1x64xf32> to vector<64xf32>
      %25 = vector.shape_cast %24 : vector<64xf32> to vector<1x1x64xf32>
      %26 = vector.broadcast %25 : vector<1x1x64xf32> to vector<8x8x64xf32>
      %27 = arith.mulf %20, %26 : vector<8x8x64xf32>
      %cst_20 = arith.constant dense<0.000000e+00> : vector<8x8xf32>
      %28 = vector.multi_reduction <add>, %27, %cst_20 [2] : vector<8x8x64xf32> to vector<8x8xf32>
      %c0_21 = arith.constant 0 : index
      %c0_22 = arith.constant 0 : index
      %c0_23 = arith.constant 0 : index
      %29 = vector.load %arg6[%c0_21, %c0_22, %c0_23] : memref<3x16x8xf32, #tpu.memory_space<vmem>>, vector<1x16x8xf32>
      %30 = vector.shape_cast %29 : vector<1x16x8xf32> to vector<16x8xf32>
      %cst_24 = arith.constant dense<0.000000e+00> : vector<16x8xf32>
      %31 = tpu.matmul %30, %28, %cst_24 {dimension_numbers = #tpu.dot_dimension_numbers<[1], [0], [0], [1], [0, 0, 1, 1], [], []>} : vector<16x8xf32>, vector<8x8xf32>, vector<16x8xf32> -> vector<16x8xf32>
      %32 = arith.addf %22, %31 : vector<16x8xf32>
      %c3 = arith.constant 3 : index
      %c0_25 = arith.constant 0 : index
      %33 = vector.load %arg4[%c3, %c0_25] : memref<9x64xf32, #tpu.memory_space<vmem>>, vector<1x64xf32>
      %34 = vector.shape_cast %33 : vector<1x64xf32> to vector<64xf32>
      %35 = vector.shape_cast %34 : vector<64xf32> to vector<1x1x64xf32>
      %36 = vector.broadcast %35 : vector<1x1x64xf32> to vector<8x8x64xf32>
      %37 = arith.mulf %20, %36 : vector<8x8x64xf32>
      %cst_26 = arith.constant dense<0.000000e+00> : vector<8x8xf32>
      %38 = vector.multi_reduction <add>, %37, %cst_26 [2] : vector<8x8x64xf32> to vector<8x8xf32>
      %c1 = arith.constant 1 : index
      %c0_27 = arith.constant 0 : index
      %c0_28 = arith.constant 0 : index
      %39 = vector.load %arg6[%c1, %c0_27, %c0_28] : memref<3x16x8xf32, #tpu.memory_space<vmem>>, vector<1x16x8xf32>
      %40 = vector.shape_cast %39 : vector<1x16x8xf32> to vector<16x8xf32>
      %cst_29 = arith.constant dense<0.000000e+00> : vector<16x8xf32>
      %41 = tpu.matmul %40, %38, %cst_29 {dimension_numbers = #tpu.dot_dimension_numbers<[1], [0], [0], [1], [0, 0, 1, 1], [], []>} : vector<16x8xf32>, vector<8x8xf32>, vector<16x8xf32> -> vector<16x8xf32>
      %42 = arith.addf %32, %41 : vector<16x8xf32>
      %c6 = arith.constant 6 : index
      %c0_30 = arith.constant 0 : index
      %43 = vector.load %arg4[%c6, %c0_30] : memref<9x64xf32, #tpu.memory_space<vmem>>, vector<1x64xf32>
      %44 = vector.shape_cast %43 : vector<1x64xf32> to vector<64xf32>
      %45 = vector.shape_cast %44 : vector<64xf32> to vector<1x1x64xf32>
      %46 = vector.broadcast %45 : vector<1x1x64xf32> to vector<8x8x64xf32>
      %47 = arith.mulf %20, %46 : vector<8x8x64xf32>
      %cst_31 = arith.constant dense<0.000000e+00> : vector<8x8xf32>
      %48 = vector.multi_reduction <add>, %47, %cst_31 [2] : vector<8x8x64xf32> to vector<8x8xf32>
      %c2 = arith.constant 2 : index
      %c0_32 = arith.constant 0 : index
      %c0_33 = arith.constant 0 : index
      %49 = vector.load %arg6[%c2, %c0_32, %c0_33] : memref<3x16x8xf32, #tpu.memory_space<vmem>>, vector<1x16x8xf32>
      %50 = vector.shape_cast %49 : vector<1x16x8xf32> to vector<16x8xf32>
      %cst_34 = arith.constant dense<0.000000e+00> : vector<16x8xf32>
      %51 = tpu.matmul %50, %48, %cst_34 {dimension_numbers = #tpu.dot_dimension_numbers<[1], [0], [0], [1], [0, 0, 1, 1], [], []>} : vector<16x8xf32>, vector<8x8xf32>, vector<16x8xf32> -> vector<16x8xf32>
      %52 = arith.addf %42, %51 : vector<16x8xf32>
      %c0_35 = arith.constant 0 : index
      %c0_36 = arith.constant 0 : index
      %c0_37 = arith.constant 0 : index
      %53 = vector.load %arg7[%c0_35, %c0_36, %c0_37] : memref<3x8x16xf32, #tpu.memory_space<vmem>>, vector<1x8x16xf32>
      %54 = vector.shape_cast %53 : vector<1x8x16xf32> to vector<8x16xf32>
      %cst_38 = arith.constant dense<0.000000e+00> : vector<16x16xf32>
      %55 = tpu.matmul %52, %54, %cst_38 {dimension_numbers = #tpu.dot_dimension_numbers<[1], [0], [0], [1], [0, 0, 1, 1], [], []>} : vector<16x8xf32>, vector<8x16xf32>, vector<16x16xf32> -> vector<16x16xf32>
      %56 = arith.addf %21, %55 : vector<16x16xf32>
      %cst_39 = arith.constant 0.000000e+00 : f32
      %57 = vector.broadcast %cst_39 : f32 to vector<16x8xf32>
      %c1_40 = arith.constant 1 : index
      %c0_41 = arith.constant 0 : index
      %58 = vector.load %arg4[%c1_40, %c0_41] : memref<9x64xf32, #tpu.memory_space<vmem>>, vector<1x64xf32>
      %59 = vector.shape_cast %58 : vector<1x64xf32> to vector<64xf32>
      %60 = vector.shape_cast %59 : vector<64xf32> to vector<1x1x64xf32>
      %61 = vector.broadcast %60 : vector<1x1x64xf32> to vector<8x8x64xf32>
      %62 = arith.mulf %20, %61 : vector<8x8x64xf32>
      %cst_42 = arith.constant dense<0.000000e+00> : vector<8x8xf32>
      %63 = vector.multi_reduction <add>, %62, %cst_42 [2] : vector<8x8x64xf32> to vector<8x8xf32>
      %c0_43 = arith.constant 0 : index
      %c0_44 = arith.constant 0 : index
      %c0_45 = arith.constant 0 : index
      %64 = vector.load %arg6[%c0_43, %c0_44, %c0_45] : memref<3x16x8xf32, #tpu.memory_space<vmem>>, vector<1x16x8xf32>
      %65 = vector.shape_cast %64 : vector<1x16x8xf32> to vector<16x8xf32>
      %cst_46 = arith.constant dense<0.000000e+00> : vector<16x8xf32>
      %66 = tpu.matmul %65, %63, %cst_46 {dimension_numbers = #tpu.dot_dimension_numbers<[1], [0], [0], [1], [0, 0, 1, 1], [], []>} : vector<16x8xf32>, vector<8x8xf32>, vector<16x8xf32> -> vector<16x8xf32>
      %67 = arith.addf %57, %66 : vector<16x8xf32>
      %c4 = arith.constant 4 : index
      %c0_47 = arith.constant 0 : index
      %68 = vector.load %arg4[%c4, %c0_47] : memref<9x64xf32, #tpu.memory_space<vmem>>, vector<1x64xf32>
      %69 = vector.shape_cast %68 : vector<1x64xf32> to vector<64xf32>
      %70 = vector.shape_cast %69 : vector<64xf32> to vector<1x1x64xf32>
      %71 = vector.broadcast %70 : vector<1x1x64xf32> to vector<8x8x64xf32>
      %72 = arith.mulf %20, %71 : vector<8x8x64xf32>
      %cst_48 = arith.constant dense<0.000000e+00> : vector<8x8xf32>
      %73 = vector.multi_reduction <add>, %72, %cst_48 [2] : vector<8x8x64xf32> to vector<8x8xf32>
      %c1_49 = arith.constant 1 : index
      %c0_50 = arith.constant 0 : index
      %c0_51 = arith.constant 0 : index
      %74 = vector.load %arg6[%c1_49, %c0_50, %c0_51] : memref<3x16x8xf32, #tpu.memory_space<vmem>>, vector<1x16x8xf32>
      %75 = vector.shape_cast %74 : vector<1x16x8xf32> to vector<16x8xf32>
      %cst_52 = arith.constant dense<0.000000e+00> : vector<16x8xf32>
      %76 = tpu.matmul %75, %73, %cst_52 {dimension_numbers = #tpu.dot_dimension_numbers<[1], [0], [0], [1], [0, 0, 1, 1], [], []>} : vector<16x8xf32>, vector<8x8xf32>, vector<16x8xf32> -> vector<16x8xf32>
      %77 = arith.addf %67, %76 : vector<16x8xf32>
      %c7 = arith.constant 7 : index
      %c0_53 = arith.constant 0 : index
      %78 = vector.load %arg4[%c7, %c0_53] : memref<9x64xf32, #tpu.memory_space<vmem>>, vector<1x64xf32>
      %79 = vector.shape_cast %78 : vector<1x64xf32> to vector<64xf32>
      %80 = vector.shape_cast %79 : vector<64xf32> to vector<1x1x64xf32>
      %81 = vector.broadcast %80 : vector<1x1x64xf32> to vector<8x8x64xf32>
      %82 = arith.mulf %20, %81 : vector<8x8x64xf32>
      %cst_54 = arith.constant dense<0.000000e+00> : vector<8x8xf32>
      %83 = vector.multi_reduction <add>, %82, %cst_54 [2] : vector<8x8x64xf32> to vector<8x8xf32>
      %c2_55 = arith.constant 2 : index
      %c0_56 = arith.constant 0 : index
      %c0_57 = arith.constant 0 : index
      %84 = vector.load %arg6[%c2_55, %c0_56, %c0_57] : memref<3x16x8xf32, #tpu.memory_space<vmem>>, vector<1x16x8xf32>
      %85 = vector.shape_cast %84 : vector<1x16x8xf32> to vector<16x8xf32>
      %cst_58 = arith.constant dense<0.000000e+00> : vector<16x8xf32>
      %86 = tpu.matmul %85, %83, %cst_58 {dimension_numbers = #tpu.dot_dimension_numbers<[1], [0], [0], [1], [0, 0, 1, 1], [], []>} : vector<16x8xf32>, vector<8x8xf32>, vector<16x8xf32> -> vector<16x8xf32>
      %87 = arith.addf %77, %86 : vector<16x8xf32>
      %c1_59 = arith.constant 1 : index
      %c0_60 = arith.constant 0 : index
      %c0_61 = arith.constant 0 : index
      %88 = vector.load %arg7[%c1_59, %c0_60, %c0_61] : memref<3x8x16xf32, #tpu.memory_space<vmem>>, vector<1x8x16xf32>
      %89 = vector.shape_cast %88 : vector<1x8x16xf32> to vector<8x16xf32>
      %cst_62 = arith.constant dense<0.000000e+00> : vector<16x16xf32>
      %90 = tpu.matmul %87, %89, %cst_62 {dimension_numbers = #tpu.dot_dimension_numbers<[1], [0], [0], [1], [0, 0, 1, 1], [], []>} : vector<16x8xf32>, vector<8x16xf32>, vector<16x16xf32> -> vector<16x16xf32>
      %91 = arith.addf %56, %90 : vector<16x16xf32>
      %cst_63 = arith.constant 0.000000e+00 : f32
      %92 = vector.broadcast %cst_63 : f32 to vector<16x8xf32>
      %c2_64 = arith.constant 2 : index
      %c0_65 = arith.constant 0 : index
      %93 = vector.load %arg4[%c2_64, %c0_65] : memref<9x64xf32, #tpu.memory_space<vmem>>, vector<1x64xf32>
      %94 = vector.shape_cast %93 : vector<1x64xf32> to vector<64xf32>
      %95 = vector.shape_cast %94 : vector<64xf32> to vector<1x1x64xf32>
      %96 = vector.broadcast %95 : vector<1x1x64xf32> to vector<8x8x64xf32>
      %97 = arith.mulf %20, %96 : vector<8x8x64xf32>
      %cst_66 = arith.constant dense<0.000000e+00> : vector<8x8xf32>
      %98 = vector.multi_reduction <add>, %97, %cst_66 [2] : vector<8x8x64xf32> to vector<8x8xf32>
      %c0_67 = arith.constant 0 : index
      %c0_68 = arith.constant 0 : index
      %c0_69 = arith.constant 0 : index
      %99 = vector.load %arg6[%c0_67, %c0_68, %c0_69] : memref<3x16x8xf32, #tpu.memory_space<vmem>>, vector<1x16x8xf32>
      %100 = vector.shape_cast %99 : vector<1x16x8xf32> to vector<16x8xf32>
      %cst_70 = arith.constant dense<0.000000e+00> : vector<16x8xf32>
      %101 = tpu.matmul %100, %98, %cst_70 {dimension_numbers = #tpu.dot_dimension_numbers<[1], [0], [0], [1], [0, 0, 1, 1], [], []>} : vector<16x8xf32>, vector<8x8xf32>, vector<16x8xf32> -> vector<16x8xf32>
      %102 = arith.addf %92, %101 : vector<16x8xf32>
      %c5 = arith.constant 5 : index
      %c0_71 = arith.constant 0 : index
      %103 = vector.load %arg4[%c5, %c0_71] : memref<9x64xf32, #tpu.memory_space<vmem>>, vector<1x64xf32>
      %104 = vector.shape_cast %103 : vector<1x64xf32> to vector<64xf32>
      %105 = vector.shape_cast %104 : vector<64xf32> to vector<1x1x64xf32>
      %106 = vector.broadcast %105 : vector<1x1x64xf32> to vector<8x8x64xf32>
      %107 = arith.mulf %20, %106 : vector<8x8x64xf32>
      %cst_72 = arith.constant dense<0.000000e+00> : vector<8x8xf32>
      %108 = vector.multi_reduction <add>, %107, %cst_72 [2] : vector<8x8x64xf32> to vector<8x8xf32>
      %c1_73 = arith.constant 1 : index
      %c0_74 = arith.constant 0 : index
      %c0_75 = arith.constant 0 : index
      %109 = vector.load %arg6[%c1_73, %c0_74, %c0_75] : memref<3x16x8xf32, #tpu.memory_space<vmem>>, vector<1x16x8xf32>
      %110 = vector.shape_cast %109 : vector<1x16x8xf32> to vector<16x8xf32>
      %cst_76 = arith.constant dense<0.000000e+00> : vector<16x8xf32>
      %111 = tpu.matmul %110, %108, %cst_76 {dimension_numbers = #tpu.dot_dimension_numbers<[1], [0], [0], [1], [0, 0, 1, 1], [], []>} : vector<16x8xf32>, vector<8x8xf32>, vector<16x8xf32> -> vector<16x8xf32>
      %112 = arith.addf %102, %111 : vector<16x8xf32>
      %c8 = arith.constant 8 : index
      %c0_77 = arith.constant 0 : index
      %113 = vector.load %arg4[%c8, %c0_77] : memref<9x64xf32, #tpu.memory_space<vmem>>, vector<1x64xf32>
      %114 = vector.shape_cast %113 : vector<1x64xf32> to vector<64xf32>
      %115 = vector.shape_cast %114 : vector<64xf32> to vector<1x1x64xf32>
      %116 = vector.broadcast %115 : vector<1x1x64xf32> to vector<8x8x64xf32>
      %117 = arith.mulf %20, %116 : vector<8x8x64xf32>
      %cst_78 = arith.constant dense<0.000000e+00> : vector<8x8xf32>
      %118 = vector.multi_reduction <add>, %117, %cst_78 [2] : vector<8x8x64xf32> to vector<8x8xf32>
      %c2_79 = arith.constant 2 : index
      %c0_80 = arith.constant 0 : index
      %c0_81 = arith.constant 0 : index
      %119 = vector.load %arg6[%c2_79, %c0_80, %c0_81] : memref<3x16x8xf32, #tpu.memory_space<vmem>>, vector<1x16x8xf32>
      %120 = vector.shape_cast %119 : vector<1x16x8xf32> to vector<16x8xf32>
      %cst_82 = arith.constant dense<0.000000e+00> : vector<16x8xf32>
      %121 = tpu.matmul %120, %118, %cst_82 {dimension_numbers = #tpu.dot_dimension_numbers<[1], [0], [0], [1], [0, 0, 1, 1], [], []>} : vector<16x8xf32>, vector<8x8xf32>, vector<16x8xf32> -> vector<16x8xf32>
      %122 = arith.addf %112, %121 : vector<16x8xf32>
      %c2_83 = arith.constant 2 : index
      %c0_84 = arith.constant 0 : index
      %c0_85 = arith.constant 0 : index
      %123 = vector.load %arg7[%c2_83, %c0_84, %c0_85] : memref<3x8x16xf32, #tpu.memory_space<vmem>>, vector<1x8x16xf32>
      %124 = vector.shape_cast %123 : vector<1x8x16xf32> to vector<8x16xf32>
      %cst_86 = arith.constant dense<0.000000e+00> : vector<16x16xf32>
      %125 = tpu.matmul %122, %124, %cst_86 {dimension_numbers = #tpu.dot_dimension_numbers<[1], [0], [0], [1], [0, 0, 1, 1], [], []>} : vector<16x8xf32>, vector<8x16xf32>, vector<16x16xf32> -> vector<16x16xf32>
      %126 = arith.addf %91, %125 : vector<16x16xf32>
      %c0_87 = arith.constant 0 : index
      %c0_88 = arith.constant 0 : index
      %127 = vector.load %arg5[%c0_87, %c0_88] : memref<1x1xf32, #tpu.memory_space<vmem>>, vector<1x1xf32>
      %128 = vector.extract %127[0, 0] : f32 from vector<1x1xf32>
      %129 = vector.broadcast %128 : f32 to vector<16x16xf32>
      %130 = arith.addf %126, %129 : vector<16x16xf32>
      %cst_89 = arith.constant 0.000000e+00 : f32
      %131 = vector.broadcast %cst_89 : f32 to vector<16x16xf32>
      %132 = arith.subf %131, %130 : vector<16x16xf32>
      %133 = math.exp %132 : vector<16x16xf32>
      %cst_90 = arith.constant 1.000000e+00 : f32
      %134 = vector.broadcast %cst_90 : f32 to vector<16x16xf32>
      %135 = arith.addf %134, %133 : vector<16x16xf32>
      %cst_91 = arith.constant 1.000000e+00 : f32
      %136 = vector.broadcast %cst_91 : f32 to vector<16x16xf32>
      %137 = arith.divf %136, %135 : vector<16x16xf32>
      %138 = vector.extract_strided_slice %137 {offsets = [0, 0], sizes = [1, 16], strides = [1, 1]} : vector<16x16xf32> to vector<1x16xf32>
      %c0_92 = arith.constant 0 : index
      %c0_93 = arith.constant 0 : index
      %139 = vector.load %arg11[%c0_92, %c0_93] : memref<1x256xf32, #tpu.memory_space<vmem>>, vector<1x16xf32>
      tpu.vector_store %arg11[%c0_92, %c0_93], %138 {strides = array<i32>} : memref<1x256xf32, #tpu.memory_space<vmem>>, vector<1x16xf32>,
      %140 = vector.extract_strided_slice %137 {offsets = [1, 0], sizes = [1, 16], strides = [1, 1]} : vector<16x16xf32> to vector<1x16xf32>
      %c0_94 = arith.constant 0 : index
      %c16 = arith.constant 16 : index
      %141 = vector.load %arg11[%c0_94, %c16] : memref<1x256xf32, #tpu.memory_space<vmem>>, vector<1x16xf32>
      tpu.vector_store %arg11[%c0_94, %c16], %140 {strides = array<i32>} : memref<1x256xf32, #tpu.memory_space<vmem>>, vector<1x16xf32>,
      %142 = vector.extract_strided_slice %137 {offsets = [2, 0], sizes = [1, 16], strides = [1, 1]} : vector<16x16xf32> to vector<1x16xf32>
      %c0_95 = arith.constant 0 : index
      %c32 = arith.constant 32 : index
      %143 = vector.load %arg11[%c0_95, %c32] : memref<1x256xf32, #tpu.memory_space<vmem>>, vector<1x16xf32>
      tpu.vector_store %arg11[%c0_95, %c32], %142 {strides = array<i32>} : memref<1x256xf32, #tpu.memory_space<vmem>>, vector<1x16xf32>,
      %144 = vector.extract_strided_slice %137 {offsets = [3, 0], sizes = [1, 16], strides = [1, 1]} : vector<16x16xf32> to vector<1x16xf32>
      %c0_96 = arith.constant 0 : index
      %c48 = arith.constant 48 : index
      %145 = vector.load %arg11[%c0_96, %c48] : memref<1x256xf32, #tpu.memory_space<vmem>>, vector<1x16xf32>
      tpu.vector_store %arg11[%c0_96, %c48], %144 {strides = array<i32>} : memref<1x256xf32, #tpu.memory_space<vmem>>, vector<1x16xf32>,
      %146 = vector.extract_strided_slice %137 {offsets = [4, 0], sizes = [1, 16], strides = [1, 1]} : vector<16x16xf32> to vector<1x16xf32>
      %c0_97 = arith.constant 0 : index
      %c64 = arith.constant 64 : index
      %147 = vector.load %arg11[%c0_97, %c64] : memref<1x256xf32, #tpu.memory_space<vmem>>, vector<1x16xf32>
      tpu.vector_store %arg11[%c0_97, %c64], %146 {strides = array<i32>} : memref<1x256xf32, #tpu.memory_space<vmem>>, vector<1x16xf32>,
      %148 = vector.extract_strided_slice %137 {offsets = [5, 0], sizes = [1, 16], strides = [1, 1]} : vector<16x16xf32> to vector<1x16xf32>
      %c0_98 = arith.constant 0 : index
      %c80 = arith.constant 80 : index
      %149 = vector.load %arg11[%c0_98, %c80] : memref<1x256xf32, #tpu.memory_space<vmem>>, vector<1x16xf32>
      tpu.vector_store %arg11[%c0_98, %c80], %148 {strides = array<i32>} : memref<1x256xf32, #tpu.memory_space<vmem>>, vector<1x16xf32>,
      %150 = vector.extract_strided_slice %137 {offsets = [6, 0], sizes = [1, 16], strides = [1, 1]} : vector<16x16xf32> to vector<1x16xf32>
      %c0_99 = arith.constant 0 : index
      %c96 = arith.constant 96 : index
      %151 = vector.load %arg11[%c0_99, %c96] : memref<1x256xf32, #tpu.memory_space<vmem>>, vector<1x16xf32>
      tpu.vector_store %arg11[%c0_99, %c96], %150 {strides = array<i32>} : memref<1x256xf32, #tpu.memory_space<vmem>>, vector<1x16xf32>,
      %152 = vector.extract_strided_slice %137 {offsets = [7, 0], sizes = [1, 16], strides = [1, 1]} : vector<16x16xf32> to vector<1x16xf32>
      %c0_100 = arith.constant 0 : index
      %c112 = arith.constant 112 : index
      %153 = vector.load %arg11[%c0_100, %c112] : memref<1x256xf32, #tpu.memory_space<vmem>>, vector<1x16xf32>
      tpu.vector_store %arg11[%c0_100, %c112], %152 {strides = array<i32>} : memref<1x256xf32, #tpu.memory_space<vmem>>, vector<1x16xf32>,
      %154 = vector.extract_strided_slice %137 {offsets = [8, 0], sizes = [1, 16], strides = [1, 1]} : vector<16x16xf32> to vector<1x16xf32>
      %c0_101 = arith.constant 0 : index
      %c128 = arith.constant 128 : index
      %155 = vector.load %arg11[%c0_101, %c128] : memref<1x256xf32, #tpu.memory_space<vmem>>, vector<1x16xf32>
      tpu.vector_store %arg11[%c0_101, %c128], %154 {strides = array<i32>} : memref<1x256xf32, #tpu.memory_space<vmem>>, vector<1x16xf32>,
      %156 = vector.extract_strided_slice %137 {offsets = [9, 0], sizes = [1, 16], strides = [1, 1]} : vector<16x16xf32> to vector<1x16xf32>
      %c0_102 = arith.constant 0 : index
      %c144 = arith.constant 144 : index
      %157 = vector.load %arg11[%c0_102, %c144] : memref<1x256xf32, #tpu.memory_space<vmem>>, vector<1x16xf32>
      tpu.vector_store %arg11[%c0_102, %c144], %156 {strides = array<i32>} : memref<1x256xf32, #tpu.memory_space<vmem>>, vector<1x16xf32>,
      %158 = vector.extract_strided_slice %137 {offsets = [10, 0], sizes = [1, 16], strides = [1, 1]} : vector<16x16xf32> to vector<1x16xf32>
      %c0_103 = arith.constant 0 : index
      %c160 = arith.constant 160 : index
      %159 = vector.load %arg11[%c0_103, %c160] : memref<1x256xf32, #tpu.memory_space<vmem>>, vector<1x16xf32>
      tpu.vector_store %arg11[%c0_103, %c160], %158 {strides = array<i32>} : memref<1x256xf32, #tpu.memory_space<vmem>>, vector<1x16xf32>,
      %160 = vector.extract_strided_slice %137 {offsets = [11, 0], sizes = [1, 16], strides = [1, 1]} : vector<16x16xf32> to vector<1x16xf32>
      %c0_104 = arith.constant 0 : index
      %c176 = arith.constant 176 : index
      %161 = vector.load %arg11[%c0_104, %c176] : memref<1x256xf32, #tpu.memory_space<vmem>>, vector<1x16xf32>
      tpu.vector_store %arg11[%c0_104, %c176], %160 {strides = array<i32>} : memref<1x256xf32, #tpu.memory_space<vmem>>, vector<1x16xf32>,
      %162 = vector.extract_strided_slice %137 {offsets = [12, 0], sizes = [1, 16], strides = [1, 1]} : vector<16x16xf32> to vector<1x16xf32>
      %c0_105 = arith.constant 0 : index
      %c192 = arith.constant 192 : index
      %163 = vector.load %arg11[%c0_105, %c192] : memref<1x256xf32, #tpu.memory_space<vmem>>, vector<1x16xf32>
      tpu.vector_store %arg11[%c0_105, %c192], %162 {strides = array<i32>} : memref<1x256xf32, #tpu.memory_space<vmem>>, vector<1x16xf32>,
      %164 = vector.extract_strided_slice %137 {offsets = [13, 0], sizes = [1, 16], strides = [1, 1]} : vector<16x16xf32> to vector<1x16xf32>
      %c0_106 = arith.constant 0 : index
      %c208 = arith.constant 208 : index
      %165 = vector.load %arg11[%c0_106, %c208] : memref<1x256xf32, #tpu.memory_space<vmem>>, vector<1x16xf32>
      tpu.vector_store %arg11[%c0_106, %c208], %164 {strides = array<i32>} : memref<1x256xf32, #tpu.memory_space<vmem>>, vector<1x16xf32>,
      %166 = vector.extract_strided_slice %137 {offsets = [14, 0], sizes = [1, 16], strides = [1, 1]} : vector<16x16xf32> to vector<1x16xf32>
      %c0_107 = arith.constant 0 : index
      %c224 = arith.constant 224 : index
      %167 = vector.load %arg11[%c0_107, %c224] : memref<1x256xf32, #tpu.memory_space<vmem>>, vector<1x16xf32>
      tpu.vector_store %arg11[%c0_107, %c224], %166 {strides = array<i32>} : memref<1x256xf32, #tpu.memory_space<vmem>>, vector<1x16xf32>,
      %168 = vector.extract_strided_slice %137 {offsets = [15, 0], sizes = [1, 16], strides = [1, 1]} : vector<16x16xf32> to vector<1x16xf32>
      %c0_108 = arith.constant 0 : index
      %c240 = arith.constant 240 : index
      %169 = vector.load %arg11[%c0_108, %c240] : memref<1x256xf32, #tpu.memory_space<vmem>>, vector<1x16xf32>
      tpu.vector_store %arg11[%c0_108, %c240], %168 {strides = array<i32>} : memref<1x256xf32, #tpu.memory_space<vmem>>, vector<1x16xf32>,
    } else {
    }
    %c0 = arith.constant 0 : index
    %c0_1 = arith.constant 0 : index
    %c0_2 = arith.constant 0 : index
    %3 = vector.load %arg2[%c0, %c0_1, %c0_2] : memref<1x32x256xf32, #tpu.memory_space<vmem>>, vector<1x32x256xf32>
    %4 = vector.shape_cast %3 : vector<1x32x256xf32> to vector<32x256xf32>
    %c0_3 = arith.constant 0 : index
    %c0_4 = arith.constant 0 : index
    %5 = vector.load %arg8[%c0_3, %c0_4] : memref<32x1xf32, #tpu.memory_space<vmem>>, vector<32x1xf32>
    %6 = vector.broadcast %5 : vector<32x1xf32> to vector<32x256xf32>
    %7 = arith.mulf %4, %6 : vector<32x256xf32>
    %c0_5 = arith.constant 0 : index
    %c0_6 = arith.constant 0 : index
    %8 = vector.load %arg9[%c0_5, %c0_6] : memref<32x1xf32, #tpu.memory_space<vmem>>, vector<32x1xf32>
    %9 = vector.broadcast %8 : vector<32x1xf32> to vector<32x256xf32>
    %10 = arith.addf %7, %9 : vector<32x256xf32>
    %cst = arith.constant 0.000000e+00 : f32
    %11 = vector.broadcast %cst : f32 to vector<32x256xf32>
    %12 = arith.maximumf %10, %11 : vector<32x256xf32>
    %c0_7 = arith.constant 0 : index
    %c0_8 = arith.constant 0 : index
    %13 = vector.load %arg11[%c0_7, %c0_8] : memref<1x256xf32, #tpu.memory_space<vmem>>, vector<1x256xf32>
    %14 = vector.broadcast %13 : vector<1x256xf32> to vector<32x256xf32>
    %15 = arith.mulf %12, %14 : vector<32x256xf32>
    %c0_9 = arith.constant 0 : index
    %c0_10 = arith.constant 0 : index
    %c0_11 = arith.constant 0 : index
    %16 = vector.load %arg10[%c0_9, %c0_10, %c0_11] : memref<1x32x256xf32, #tpu.memory_space<vmem>>, vector<1x32x256xf32>
    %17 = vector.shape_cast %16 : vector<1x32x256xf32> to vector<32x256xf32>
    %18 = vector.shape_cast %15 : vector<32x256xf32> to vector<1x32x256xf32>
    tpu.vector_store %arg10[%c0_9, %c0_10, %c0_11], %18 {strides = array<i32>} : memref<1x32x256xf32, #tpu.memory_space<vmem>>, vector<1x32x256xf32>,
    return
  }
  func.func @transform_0(%arg0: i32, %arg1: i32) -> (i32, i32, i32) {
    %c0_i32 = arith.constant 0 : i32
    %c0_i32_0 = arith.constant 0 : i32
    return %arg0, %arg1, %c0_i32 : i32, i32, i32
  }
  func.func @transform_1(%arg0: i32, %arg1: i32) -> (i32, i32, i32, i32) {
    %c0_i32 = arith.constant 0 : i32
    %c0_i32_0 = arith.constant 0 : i32
    %c0_i32_1 = arith.constant 0 : i32
    %c0_i32_2 = arith.constant 0 : i32
    return %arg0, %c0_i32, %c0_i32_0, %c0_i32_1 : i32, i32, i32, i32
  }
  func.func @transform_2(%arg0: i32, %arg1: i32) -> (i32, i32) {
    %c0_i32 = arith.constant 0 : i32
    %c0_i32_0 = arith.constant 0 : i32
    %c0_i32_1 = arith.constant 0 : i32
    return %c0_i32, %c0_i32_0 : i32, i32
  }
  func.func @transform_3(%arg0: i32, %arg1: i32) -> (i32, i32) {
    %c0_i32 = arith.constant 0 : i32
    %c0_i32_0 = arith.constant 0 : i32
    %c0_i32_1 = arith.constant 0 : i32
    return %c0_i32, %c0_i32_0 : i32, i32
  }
  func.func @transform_4(%arg0: i32, %arg1: i32) -> (i32, i32, i32) {
    %c0_i32 = arith.constant 0 : i32
    %c0_i32_0 = arith.constant 0 : i32
    %c0_i32_1 = arith.constant 0 : i32
    %c0_i32_2 = arith.constant 0 : i32
    return %c0_i32, %c0_i32_0, %c0_i32_1 : i32, i32, i32
  }
  func.func @transform_5(%arg0: i32, %arg1: i32) -> (i32, i32, i32) {
    %c0_i32 = arith.constant 0 : i32
    %c0_i32_0 = arith.constant 0 : i32
    %c0_i32_1 = arith.constant 0 : i32
    %c0_i32_2 = arith.constant 0 : i32
    return %c0_i32, %c0_i32_0, %c0_i32_1 : i32, i32, i32
  }
  func.func @transform_6(%arg0: i32, %arg1: i32) -> (i32, i32) {
    %c0_i32 = arith.constant 0 : i32
    %c0_i32_0 = arith.constant 0 : i32
    return %arg1, %c0_i32 : i32, i32
  }
  func.func @transform_7(%arg0: i32, %arg1: i32) -> (i32, i32) {
    %c0_i32 = arith.constant 0 : i32
    %c0_i32_0 = arith.constant 0 : i32
    return %arg1, %c0_i32 : i32, i32
  }
  func.func @transform_8(%arg0: i32, %arg1: i32) -> (i32, i32, i32) {
    %c0_i32 = arith.constant 0 : i32
    %c0_i32_0 = arith.constant 0 : i32
    return %arg0, %arg1, %c0_i32 : i32, i32, i32
  }
}

</mosaic_0001>

<llo_original>
// kernel: tpu_custom_call.1
$region0: #{tpu_custom_call.1}
  #allocation0 [shape = 'u32[]', space=smem, size = 0x4, offset = 0x4, fixed_abs, tag = 'smem constant byte address 0x4 - core index']
  #allocation1 [shape = 'u32[144,128]{1,0:T(1,128)}', space=vmem, size = 0x12000, scoped, tag = 'internal scratch']
  #allocation2 [shape = 'f32[1,256]{1,0:T(1,128)}', space=vmem, size = 0x400, scoped, tag = 'scratch operand']
  #allocation3 [shape = 'f32[1,1]{1,0:T(1,128)S(1)}', space=vmem, size = 0x200, scoped, tag = 'scoped memory for tpu_custom_call.1']
  %s0 = inlined_call_operand.hbm [shape: f32[2,64,256], index: 0, kind: input, shape index: {}]
  %s1 = inlined_call_operand.vmem [shape: f32[2,8,8,64], index: 1, kind: input, shape index: {}]
  %s2 = inlined_call_operand.vmem [shape: f32[9,64], index: 2, kind: input, shape index: {}]
  %s3 = inlined_call_operand.<no memory space> [shape: f32[1,1], index: 3, kind: input, shape index: {}]
  %s4 = inlined_call_operand.vmem [shape: f32[3,16,8], index: 4, kind: input, shape index: {}]
  %s5 = inlined_call_operand.vmem [shape: f32[3,8,16], index: 5, kind: input, shape index: {}]
  %s6 = inlined_call_operand.vmem [shape: f32[64,1], index: 6, kind: input, shape index: {}]
  %s7 = inlined_call_operand.vmem [shape: f32[64,1], index: 7, kind: input, shape index: {}]
  %s8 = inlined_call_operand.hbm [shape: f32[2,64,256], index: 8, kind: output, shape index: {}]
  %s9 = sld [smem:[#allocation0]]
  $region73: #{tpu_custom_call.1} parent=0
    _
  %s11 = ssub.s32 1, %s9
  %s12 = scalar_select 0, %s11, %s9
  %v13 = vstv %s3
  %14 = vst [vmem:[#allocation3] sm:$0x1] %v13
  $region1: #{tpu_custom_call.1} parent=0
    #allocation4 [shape = 'u8[65536]{0}', space=vmem, size = 0x10000, scoped, tag = 'input window, operand 0']
    #allocation5 [shape = 's32[2]{0}', space=sflag, size = 0x8, scoped, tag = 'scoped memory for tpu_custom_call.1']
    #allocation6 [shape = 's32[2]{0}', space=sflag, size = 0x8, scoped, tag = 'scoped memory for tpu_custom_call.1']
    #allocation7 [shape = 'u8[65536]{0}', space=vmem, size = 0x10000, scoped, tag = 'output window, operand 0']
    %15 = vsyncpa [#allocation5], 0
    %s16 = scalar_lea.sflag [#allocation5], 1
    %17 = vsyncpa %s16, 0
    %18 = vsyncpa [#allocation6], 0
    %s19 = scalar_lea.sflag [#allocation6], 1
    %20 = vsyncpa %s19, 0
    loop: start=0, step=1, limit=6
    $region2: #{tpu_custom_call.1} parent=1 // loop_pre_header
      _
    $region3: #{tpu_custom_call.1} parent=1 // loop_header
      %s22 = sphi 0, %s26
      %p23 = scmp.ge.s32.totalorder %s22, 6
      %s29 = sphi 0, %s41
      %s30 = sphi 0, %s37
      %s31 = sphi 0, %s29
      %s32 = sphi 0, %s30
      %s33 = sphi 0, %s31
      %s34 = sphi 0, %s32
      %s46 = sphi 0, %s48
      %s49 = sphi 0, %s46
      %s50 = sphi 0, %s49
      %s66 = sphi 0, %s50
      %s72 = sphi 0, %s74
      %s75 = sphi 0, %s72
      %s76 = sphi 0, %s75
      %s92 = sphi 0, %s76
      %s96 = sphi 0, %s96
      %s98 = sphi 0, %s96
      %s99 = sphi 0, %s98
      %s113 = sphi 0, %s99
      %s117 = sphi 0, %s117
      %s119 = sphi 0, %s117
      %s120 = sphi 0, %s119
      %s134 = sphi 0, %s120
      %s138 = sphi 0, %s138
      %s140 = sphi 0, %s138
      %s141 = sphi 0, %s140
      %s155 = sphi 0, %s141
      %s159 = sphi 0, %s159
      %s161 = sphi 0, %s159
      %s162 = sphi 0, %s161
      %s176 = sphi 0, %s162
      %s182 = sphi 0, %s184
      %s185 = sphi 0, %s182
      %s186 = sphi 0, %s185
      %s202 = sphi 0, %s186
      %s208 = sphi 0, %s210
      %s211 = sphi 0, %s208
      %s212 = sphi 0, %s211
      %s228 = sphi 0, %s212
      %s236 = sphi 0, %s238
      %s239 = sphi 0, %s236
      %s240 = sphi 0, %s239
      %s256 = sphi 0, %s240
    $region4: #{tpu_custom_call.1} parent=1 // loop_header_branch
      %25 = sbr.rel (%p23) target = $region8
    $region5: #{tpu_custom_call.1} parent=1 // loop_body
      %s27 = ssub.s32 %s22, 1
      %s28 = ssub.s32 %s22, 2
      %s35 = sadd.s32 1, %s30
      %p36 = scmp.ge.s32.totalorder %s35, 2
      %s37 = scalar_select %p36, 0, %s35
      %s38 = sadd.s32 1, %s29
      %s39 = scalar_select %p36, %s38, %s29
      %p40 = scmp.ge.s32.totalorder %s39, 2
      %s41 = scalar_select %p40, 0, %s39
      %s42 = ssub.s32 %s29, %s41
      %s43 = ssub.s32 %s30, %s37
      %s44 = sor.u32 %s42, %s43
      %p45 = scmp.eq.s32.totalorder %s44, 0
      %s47 = sadd.s32 %s46, 1
      %s48 = scalar_select %p45, %s46, %s47
      %p51 = pneg %p45
      %p52 = scmp.eq.s32.totalorder %s22, 3
      %p53 = por %p51, %p52
      %p54 = scmp.ne.s32.totalorder %s46, %s49
      %p55 = scmp.eq.s32.totalorder %s22, 0
      %p56 = por %p54, %p55
      %p57 = scmp.ne.s32.totalorder %s46, %s49
      %p58 = scmp.eq.s32.totalorder %s27, 3
      %p59 = por %p57, %p58
      %p60 = scmp.ne.s32.totalorder %s49, %s50
      %p61 = scmp.eq.s32.totalorder %s27, 0
      %p62 = por %p60, %p61
      %p63 = scmp.ne.s32.totalorder %s49, %s50
      %p64 = scmp.eq.s32.totalorder %s28, 3
      %p65 = por %p63, %p64
      %p67 = scmp.ne.s32.totalorder %s50, %s66
      %p68 = scmp.eq.s32.totalorder %s28, 0
      %p69 = por %p67, %p68
      %s70 = ssub.s32 %s29, %s41
      %p71 = scmp.eq.s32.totalorder %s70, 0
      %s73 = sadd.s32 %s72, 1
      %s74 = scalar_select %p71, %s72, %s73
      %p77 = pneg %p71
      %p78 = scmp.eq.s32.totalorder %s22, 3
      %p79 = por %p77, %p78
      %p80 = scmp.ne.s32.totalorder %s72, %s75
      %p81 = scmp.eq.s32.totalorder %s22, 0
      %p82 = por %p80, %p81
      %p83 = scmp.ne.s32.totalorder %s72, %s75
      %p84 = scmp.eq.s32.totalorder %s27, 3
      %p85 = por %p83, %p84
      %p86 = scmp.ne.s32.totalorder %s75, %s76
      %p87 = scmp.eq.s32.totalorder %s27, 0
      %p88 = por %p86, %p87
      %p89 = scmp.ne.s32.totalorder %s75, %s76
      %p90 = scmp.eq.s32.totalorder %s28, 3
      %p91 = por %p89, %p90
      %p93 = scmp.ne.s32.totalorder %s76, %s92
      %p94 = scmp.eq.s32.totalorder %s28, 0
      %p95 = por %p93, %p94
      %s97 = sadd.s32 %s96, 1
      %p100 = scmp.eq.s32.totalorder %s22, 3
      %p101 = scmp.ne.s32.totalorder %s96, %s98
      %p102 = scmp.eq.s32.totalorder %s22, 0
      %p103 = por %p101, %p102
      %p104 = scmp.ne.s32.totalorder %s96, %s98
      %p105 = scmp.eq.s32.totalorder %s27, 3
      %p106 = por %p104, %p105
      %p107 = scmp.ne.s32.totalorder %s98, %s99
      %p108 = scmp.eq.s32.totalorder %s27, 0
      %p109 = por %p107, %p108
      %p110 = scmp.ne.s32.totalorder %s98, %s99
      %p111 = scmp.eq.s32.totalorder %s28, 3
      %p112 = por %p110, %p111
      %p114 = scmp.ne.s32.totalorder %s99, %s113
      %p115 = scmp.eq.s32.totalorder %s28, 0
      %p116 = por %p114, %p115
      %s118 = sadd.s32 %s117, 1
      %p121 = scmp.eq.s32.totalorder %s22, 3
      %p122 = scmp.ne.s32.totalorder %s117, %s119
      %p123 = scmp.eq.s32.totalorder %s22, 0
      %p124 = por %p122, %p123
      %p125 = scmp.ne.s32.totalorder %s117, %s119
      %p126 = scmp.eq.s32.totalorder %s27, 3
      %p127 = por %p125, %p126
      %p128 = scmp.ne.s32.totalorder %s119, %s120
      %p129 = scmp.eq.s32.totalorder %s27, 0
      %p130 = por %p128, %p129
      %p131 = scmp.ne.s32.totalorder %s119, %s120
      %p132 = scmp.eq.s32.totalorder %s28, 3
      %p133 = por %p131, %p132
      %p135 = scmp.ne.s32.totalorder %s120, %s134
      %p136 = scmp.eq.s32.totalorder %s28, 0
      %p137 = por %p135, %p136
      %s139 = sadd.s32 %s138, 1
      %p142 = scmp.eq.s32.totalorder %s22, 3
      %p143 = scmp.ne.s32.totalorder %s138, %s140
      %p144 = scmp.eq.s32.totalorder %s22, 0
      %p145 = por %p143, %p144
      %p146 = scmp.ne.s32.totalorder %s138, %s140
      %p147 = scmp.eq.s32.totalorder %s27, 3
      %p148 = por %p146, %p147
      %p149 = scmp.ne.s32.totalorder %s140, %s141
      %p150 = scmp.eq.s32.totalorder %s27, 0
      %p151 = por %p149, %p150
      %p152 = scmp.ne.s32.totalorder %s140, %s141
      %p153 = scmp.eq.s32.totalorder %s28, 3
      %p154 = por %p152, %p153
      %p156 = scmp.ne.s32.totalorder %s141, %s155
      %p157 = scmp.eq.s32.totalorder %s28, 0
      %p158 = por %p156, %p157
      %s160 = sadd.s32 %s159, 1
      %p163 = scmp.eq.s32.totalorder %s22, 3
      %p164 = scmp.ne.s32.totalorder %s159, %s161
      %p165 = scmp.eq.s32.totalorder %s22, 0
      %p166 = por %p164, %p165
      %p167 = scmp.ne.s32.totalorder %s159, %s161
      %p168 = scmp.eq.s32.totalorder %s27, 3
      %p169 = por %p167, %p168
      %p170 = scmp.ne.s32.totalorder %s161, %s162
      %p171 = scmp.eq.s32.totalorder %s27, 0
      %p172 = por %p170, %p171
      %p173 = scmp.ne.s32.totalorder %s161, %s162
      %p174 = scmp.eq.s32.totalorder %s28, 3
      %p175 = por %p173, %p174
      %p177 = scmp.ne.s32.totalorder %s162, %s176
      %p178 = scmp.eq.s32.totalorder %s28, 0
      %p179 = por %p177, %p178
      %s180 = ssub.s32 %s30, %s37
      %p181 = scmp.eq.s32.totalorder %s180, 0
      %s183 = sadd.s32 %s182, 1
      %s184 = scalar_select %p181, %s182, %s183
      %p187 = pneg %p181
      %p188 = scmp.eq.s32.totalorder %s22, 3
      %p189 = por %p187, %p188
      %p190 = scmp.ne.s32.totalorder %s182, %s185
      %p191 = scmp.eq.s32.totalorder %s22, 0
      %p192 = por %p190, %p191
      %p193 = scmp.ne.s32.totalorder %s182, %s185
      %p194 = scmp.eq.s32.totalorder %s27, 3
      %p195 = por %p193, %p194
      %p196 = scmp.ne.s32.totalorder %s185, %s186
      %p197 = scmp.eq.s32.totalorder %s27, 0
      %p198 = por %p196, %p197
      %p199 = scmp.ne.s32.totalorder %s185, %s186
      %p200 = scmp.eq.s32.totalorder %s28, 3
      %p201 = por %p199, %p200
      %p203 = scmp.ne.s32.totalorder %s186, %s202
      %p204 = scmp.eq.s32.totalorder %s28, 0
      %p205 = por %p203, %p204
      %s206 = ssub.s32 %s30, %s37
      %p207 = scmp.eq.s32.totalorder %s206, 0
      %s209 = sadd.s32 %s208, 1
      %s210 = scalar_select %p207, %s208, %s209
      %p213 = pneg %p207
      %p214 = scmp.eq.s32.totalorder %s22, 3
      %p215 = por %p213, %p214
      %p216 = scmp.ne.s32.totalorder %s208, %s211
      %p217 = scmp.eq.s32.totalorder %s22, 0
      %p218 = por %p216, %p217
      %p219 = scmp.ne.s32.totalorder %s208, %s211
      %p220 = scmp.eq.s32.totalorder %s27, 3
      %p221 = por %p219, %p220
      %p222 = scmp.ne.s32.totalorder %s211, %s212
      %p223 = scmp.eq.s32.totalorder %s27, 0
      %p224 = por %p222, %p223
      %p225 = scmp.ne.s32.totalorder %s211, %s212
      %p226 = scmp.eq.s32.totalorder %s28, 3
      %p227 = por %p225, %p226
      %p229 = scmp.ne.s32.totalorder %s212, %s228
      %p230 = scmp.eq.s32.totalorder %s28, 0
      %p231 = por %p229, %p230
      %s232 = ssub.s32 %s29, %s41
      %s233 = ssub.s32 %s30, %s37
      %s234 = sor.u32 %s232, %s233
      %p235 = scmp.eq.s32.totalorder %s234, 0
      %s237 = sadd.s32 %s236, 1
      %s238 = scalar_select %p235, %s236, %s237
      %p241 = pneg %p235
      %p242 = scmp.eq.s32.totalorder %s22, 3
      %p243 = por %p241, %p242
      %p244 = scmp.ne.s32.totalorder %s236, %s239
      %p245 = scmp.eq.s32.totalorder %s22, 0
      %p246 = por %p244, %p245
      %p247 = scmp.ne.s32.totalorder %s236, %s239
      %p248 = scmp.eq.s32.totalorder %s27, 3
      %p249 = por %p247, %p248
      %p250 = scmp.ne.s32.totalorder %s239, %s240
      %p251 = scmp.eq.s32.totalorder %s27, 0
      %p252 = por %p250, %p251
      %p253 = scmp.ne.s32.totalorder %s239, %s240
      %p254 = scmp.eq.s32.totalorder %s28, 3
      %p255 = por %p253, %p254
      %p257 = scmp.ne.s32.totalorder %s240, %s256
      %p258 = scmp.eq.s32.totalorder %s28, 0
      %p259 = por %p257, %p258
      %p260 = scmp.le.s32.totalorder 1, %s22
      %p261 = scmp.lt.s32.totalorder %s22, 5
      %p262 = pnand %p260, %p261
      %p263 = pneg %p262
      // Predicated region
      $region9: #{tpu_custom_call.1} parent=5 // pred_check
        _
      $region10: #{tpu_custom_call.1} parent=5 // pred_check_branch
        %265 = sbr.rel (%p262) target = $region12
      $region11: #{tpu_custom_call.1} parent=5 // pred_region
        %s266 = ssub.s32 %s22, 1
        // Predicated region
        $region13: #{tpu_custom_call.1} parent=11 // pred_check
          %p267 = pneg %p109
        $region14: #{tpu_custom_call.1} parent=11 // pred_check_branch
          %269 = sbr.rel (%p267) target = $region16
        $region15: #{tpu_custom_call.1} parent=11 // pred_region
          _
        $region16: #{tpu_custom_call.1} parent=11 // pred_fallthru
          _
        // Predicated region
        $region17: #{tpu_custom_call.1} parent=11 // pred_check
          %p270 = pneg %p130
        $region18: #{tpu_custom_call.1} parent=11 // pred_check_branch
          %272 = sbr.rel (%p270) target = $region20
        $region19: #{tpu_custom_call.1} parent=11 // pred_region
          _
        $region20: #{tpu_custom_call.1} parent=11 // pred_fallthru
          _
        // Predicated region
        $region21: #{tpu_custom_call.1} parent=11 // pred_check
          %p273 = pneg %p151
        $region22: #{tpu_custom_call.1} parent=11 // pred_check_branch
          %275 = sbr.rel (%p273) target = $region24
        $region23: #{tpu_custom_call.1} parent=11 // pred_region
          _
        $region24: #{tpu_custom_call.1} parent=11 // pred_fallthru
          _
        // Predicated region
        $region25: #{tpu_custom_call.1} parent=11 // pred_check
          %p276 = pneg %p172
        $region26: #{tpu_custom_call.1} parent=11 // pred_check_branch
          %278 = sbr.rel (%p276) target = $region28
        $region27: #{tpu_custom_call.1} parent=11 // pred_region
          _
        $region28: #{tpu_custom_call.1} parent=11 // pred_fallthru
          _
      $region12: #{tpu_custom_call.1} parent=5 // pred_fallthru
        _
      %p279 = scmp.lt.s32.totalorder %s22, 4
      // Predicated region
      $region29: #{tpu_custom_call.1} parent=5 // pred_check
        %p280 = pneg %p279
      $region30: #{tpu_custom_call.1} parent=5 // pred_check_branch
        %282 = sbr.rel (%p280) target = $region32
      $region31: #{tpu_custom_call.1} parent=5 // pred_region
        // Predicated region
        $region33: #{tpu_custom_call.1} parent=31 // pred_check
          %p283 = pneg %p56
        $region34: #{tpu_custom_call.1} parent=31 // pred_check_branch
          %285 = sbr.rel (%p283) target = $region36
        $region35: #{tpu_custom_call.1} parent=31 // pred_region
          %s286 = sand.u32 %s46, 1
          %s287 = scalar_lea.sflag [#allocation5], %s286
          %s288 = sand.u32 %s46, 1
          %s289 = smul.addr %s288, 64
          %s290 = scalar_lea.vmem [#allocation4], %s289
          %s291 = smul.u32 4, %s30
          %s293 = ssub.s32 1024, 1024
          %294 = vsyncadd %s287, %s293
          %s295 = smul.addr %s291, 2
          %s296 = smul.addr %s29, 16
          %s297 = sadd.s32 %s295, %s296
          %s298 = smul.addr %s297, 128
          %s299 = scalar_lea.hbm %s0, %s298
          %s300 = sshll.u32 %s290, 4
          %s301 = int_to_ptr.vmem [resolvable:$true] %s300
          %306 = dma.hbm_to_vmem [thread:$0]  %s299, 1024, %s301, %s287, 256, 256, 16
        $region36: #{tpu_custom_call.1} parent=31 // pred_fallthru
          _
        // Predicated region
        $region37: #{tpu_custom_call.1} parent=31 // pred_check
          %p307 = pneg %p82
        $region38: #{tpu_custom_call.1} parent=31 // pred_check_branch
          %309 = sbr.rel (%p307) target = $region40
        $region39: #{tpu_custom_call.1} parent=31 // pred_region
          %p310 = scmp.lt.s32.totalorder %s29, 1
          %s311 = scalar_select %p310, %s29, 1
          %s312 = smul.addr %s311, 8
          %s313 = smul.addr %s312, 8
          %s314 = scalar_lea.vmem %s1, %s313
        $region40: #{tpu_custom_call.1} parent=31 // pred_fallthru
          _
        // Predicated region
        $region41: #{tpu_custom_call.1} parent=31 // pred_check
          %p315 = pneg %p192
        $region42: #{tpu_custom_call.1} parent=31 // pred_check_branch
          %317 = sbr.rel (%p315) target = $region44
        $region43: #{tpu_custom_call.1} parent=31 // pred_region
          %s318 = smul.u32 4, %s30
          %p319 = scmp.lt.s32.totalorder %s318, 7
          %s320 = scalar_select %p319, %s318, 7
          %s321 = smul.addr %s320, 8
          %s322 = scalar_lea.vmem %s6, %s321
          %s323 = smul.u32 4, %s30
        $region44: #{tpu_custom_call.1} parent=31 // pred_fallthru
          _
        // Predicated region
        $region45: #{tpu_custom_call.1} parent=31 // pred_check
          %p324 = pneg %p218
        $region46: #{tpu_custom_call.1} parent=31 // pred_check_branch
          %326 = sbr.rel (%p324) target = $region48
        $region47: #{tpu_custom_call.1} parent=31 // pred_region
          %s327 = smul.u32 4, %s30
          %p328 = scmp.lt.s32.totalorder %s327, 7
          %s329 = scalar_select %p328, %s327, 7
          %s330 = smul.addr %s329, 8
          %s331 = scalar_lea.vmem %s7, %s330
          %s332 = smul.u32 4, %s30
        $region48: #{tpu_custom_call.1} parent=31 // pred_fallthru
          _
      $region32: #{tpu_custom_call.1} parent=5 // pred_fallthru
        _
      %p333 = scmp.le.s32.totalorder 1, %s22
      %p334 = scmp.lt.s32.totalorder %s22, 5
      %p335 = pnand %p333, %p334
      %p336 = pneg %p335
      // Predicated region
      $region49: #{tpu_custom_call.1} parent=5 // pred_check
        _
      $region50: #{tpu_custom_call.1} parent=5 // pred_check_branch
        %338 = sbr.rel (%p335) target = $region52
      $region51: #{tpu_custom_call.1} parent=5 // pred_region
        %s339 = ssub.s32 %s22, 1
        %s340 = sand.u32 %s49, 1
        %s341 = scalar_lea.sflag [#allocation5], %s340
        %s342 = sand.u32 %s49, 1
        %s343 = smul.addr %s342, 64
        %s344 = scalar_lea.vmem [#allocation4], %s343
        // Predicated region
        $region53: #{tpu_custom_call.1} parent=51 // pred_check
          %p345 = pneg %p62
        $region54: #{tpu_custom_call.1} parent=51 // pred_check_branch
          %347 = sbr.rel (%p345) target = $region56
        $region55: #{tpu_custom_call.1} parent=51 // pred_region
          %348 = dma.done %s341, 1024
        $region56: #{tpu_custom_call.1} parent=51 // pred_fallthru
          _
        %s349 = sand.u32 %s49, 1
        %s350 = scalar_lea.sflag [#allocation5], %s349
        %s351 = sand.u32 %s49, 1
        %s352 = smul.addr %s351, 64
        %s353 = scalar_lea.vmem [#allocation4], %s352
        %p354 = pneg %p62
        %p355 = pneg %p59
        %p356 = scmp.lt.s32.totalorder %s31, 1
        %s357 = scalar_select %p356, %s31, 1
        %s358 = smul.addr %s357, 8
        %s359 = smul.addr %s358, 8
        %s360 = scalar_lea.vmem %s1, %s359
        %p361 = pneg %p88
        %p362 = pneg %p85
        %p363 = pneg %p109
        %p364 = pneg %p106
        %p365 = pneg %p130
        %p366 = pneg %p127
        %p367 = pneg %p151
        %p368 = pneg %p148
        %p369 = pneg %p172
        %p370 = pneg %p169
        %s371 = smul.u32 4, %s32
        %p372 = scmp.lt.s32.totalorder %s371, 7
        %s373 = scalar_select %p372, %s371, 7
        %s374 = smul.addr %s373, 8
        %s375 = scalar_lea.vmem %s6, %s374
        %p376 = pneg %p198
        %p377 = pneg %p195
        %s378 = smul.u32 4, %s32
        %p379 = scmp.lt.s32.totalorder %s378, 7
        %s380 = scalar_select %p379, %s378, 7
        %s381 = smul.addr %s380, 8
        %s382 = scalar_lea.vmem %s7, %s381
        %p383 = pneg %p224
        %p384 = pneg %p221
        %p385 = pneg %p252
        %p386 = pneg %p249
        %s387 = sand.u32 %s239, 1
        %s388 = scalar_lea.sflag [#allocation6], %s387
        %s389 = sand.u32 %s239, 1
        %s390 = smul.addr %s389, 64
        %s391 = scalar_lea.vmem [#allocation7], %s390
        %s392 = smul.u32 4, %s32
        %p393 = scmp.lt.s32.totalorder %s31, 1
        %s394 = scalar_select %p393, %s31, 1
        %s395 = smul.addr %s394, 8
        %s396 = smul.addr %s395, 8
        %s397 = scalar_lea.vmem %s1, %s396
        %s398 = smul.u32 4, %s32
        %p399 = scmp.lt.s32.totalorder %s398, 7
        %s400 = scalar_select %p399, %s398, 7
        %s401 = smul.addr %s400, 8
        %s402 = scalar_lea.vmem %s6, %s401
        %s403 = smul.u32 4, %s32
        %s404 = smul.u32 4, %s32
        %p405 = scmp.lt.s32.totalorder %s404, 7
        %s406 = scalar_select %p405, %s404, 7
        %s407 = smul.addr %s406, 8
        %s408 = scalar_lea.vmem %s7, %s407
        %s409 = smul.u32 4, %s32
        %s410 = smul.u32 4, %s32
        %p411 = scmp.eq.s32.totalorder %s32, 0
        // Predicated region
        $region57: #{tpu_custom_call.1} parent=51 // pred_check
          %p412 = pneg %p411
        $region58: #{tpu_custom_call.1} parent=51 // pred_check_branch
          %414 = sbr.rel (%p412) target = $region60
        $region59: #{tpu_custom_call.1} parent=51 // pred_region
          %v415 = vld [vmem:[%s397] sm:$0xff]
          %v416 = vld [vmem:[%s397 + $0x8] sm:$0xff]
          %v417 = vld [vmem:[%s397 + $0x10] sm:$0xff]
          %v418 = vld [vmem:[%s397 + $0x18] sm:$0xff]
          %v419 = vld [vmem:[%s397 + $0x20] sm:$0xff]
          %v420 = vld [vmem:[%s397 + $0x28] sm:$0xff]
          %v421 = vld [vmem:[%s397 + $0x30] sm:$0xff]
          %v422 = vld [vmem:[%s397 + $0x38] sm:$0xff]
          %v423 = vld [vmem:[%s2] sm:$0x1]
          %v424 = vlaneseq
          %v425 = vshrl.u32 %v424, 7
          %v426 = vsub.s32 0, %v425
          %v427 = vrot.slane %v423, %v426
          %v428 = vmul.f32 %v415, %v427
          %v429 = vmul.f32 %v416, %v427
          %v430 = vmul.f32 %v417, %v427
          %v431 = vmul.f32 %v418, %v427
          %v432 = vmul.f32 %v419, %v427
          %v433 = vmul.f32 %v420, %v427
          %v434 = vmul.f32 %v421, %v427
          %v435 = vmul.f32 %v422, %v427
          %vm436 = vcmask 523264
          %v437 = vsel %vm436, %v428, 0.0
          %438 = vadd.xlane.f32.xlu0 %v437
          %v439 = vpop.xlane.xlu0 %438
          %v440 = vsel %vm436, %v429, 0.0
          %441 = vadd.xlane.f32.xlu0 %v440
          %v442 = vpop.xlane.xlu0 %441
          %v443 = vsel %vm436, %v430, 0.0
          %444 = vadd.xlane.f32.xlu0 %v443
          %v445 = vpop.xlane.xlu0 %444
          %v446 = vsel %vm436, %v431, 0.0
          %447 = vadd.xlane.f32.xlu0 %v446
          %v448 = vpop.xlane.xlu0 %447
          %v449 = vsel %vm436, %v432, 0.0
          %450 = vadd.xlane.f32.xlu0 %v449
          %v451 = vpop.xlane.xlu0 %450
          %v452 = vsel %vm436, %v433, 0.0
          %453 = vadd.xlane.f32.xlu0 %v452
          %v454 = vpop.xlane.xlu0 %453
          %v455 = vsel %vm436, %v434, 0.0
          %456 = vadd.xlane.f32.xlu0 %v455
          %v457 = vpop.xlane.xlu0 %456
          %v458 = vsel %vm436, %v435, 0.0
          %459 = vadd.xlane.f32.xlu0 %v458
          %v460 = vpop.xlane.xlu0 %459
          %v461 = vld [vmem:[%s4] sm:$0xff]
          %v462 = vld [vmem:[%s4 + $0x8] sm:$0xff]
          %v463 = vld [vmem:[%s2 + $0x3] sm:$0x1]
          %v464 = vlaneseq
          %v465 = vshrl.u32 %v464, 7
          %v466 = vsub.s32 0, %v465
          %v467 = vrot.slane %v463, %v466
          %v468 = vmul.f32 %v415, %v467
          %v469 = vmul.f32 %v416, %v467
          %v470 = vmul.f32 %v417, %v467
          %v471 = vmul.f32 %v418, %v467
          %v472 = vmul.f32 %v419, %v467
          %v473 = vmul.f32 %v420, %v467
          %v474 = vmul.f32 %v421, %v467
          %v475 = vmul.f32 %v422, %v467
          %v476 = vsel %vm436, %v468, 0.0
          %477 = vadd.xlane.f32.xlu0 %v476
          %v478 = vpop.xlane.xlu0 %477
          %v479 = vsel %vm436, %v469, 0.0
          %480 = vadd.xlane.f32.xlu0 %v479
          %v481 = vpop.xlane.xlu0 %480
          %v482 = vsel %vm436, %v470, 0.0
          %483 = vadd.xlane.f32.xlu0 %v482
          %v484 = vpop.xlane.xlu0 %483
          %v485 = vsel %vm436, %v471, 0.0
          %486 = vadd.xlane.f32.xlu0 %v485
          %v487 = vpop.xlane.xlu0 %486
          %v488 = vsel %vm436, %v472, 0.0
          %489 = vadd.xlane.f32.xlu0 %v488
          %v490 = vpop.xlane.xlu0 %489
          %v491 = vsel %vm436, %v473, 0.0
          %492 = vadd.xlane.f32.xlu0 %v491
          %v493 = vpop.xlane.xlu0 %492
          %v494 = vsel %vm436, %v474, 0.0
          %495 = vadd.xlane.f32.xlu0 %v494
          %v496 = vpop.xlane.xlu0 %495
          %v497 = vsel %vm436, %v475, 0.0
          %498 = vadd.xlane.f32.xlu0 %v497
          %v499 = vpop.xlane.xlu0 %498
          %s500 = scalar_lea.vmem %s4, 16
          %v501 = vld [vmem:[%s500] sm:$0xff]
          %v502 = vld [vmem:[%s500 + $0x8] sm:$0xff]
          %v511 = vlaneseq
          %v512 = vand.u32 %v511, 127
          %v513 = vlaneseq
          %v514 = vshrl.u32 %v513, 7
          %v515 = vsub.s32 %v512, %v514
          %v516 = vrot.slane %v478, %v515
          %v517 = vlaneseq
          %v518 = vshrl.u32 %v517, 7
          %v519 = vsub.s32 %v512, %v518
          %v520 = vrot.slane %v481, %v519
          %v521 = vlaneseq
          %v522 = vshrl.u32 %v521, 7
          %v523 = vsub.s32 %v512, %v522
          %v524 = vrot.slane %v484, %v523
          %v525 = vlaneseq
          %v526 = vshrl.u32 %v525, 7
          %v527 = vsub.s32 %v512, %v526
          %v528 = vrot.slane %v487, %v527
          %v529 = vlaneseq
          %v530 = vshrl.u32 %v529, 7
          %v531 = vsub.s32 %v512, %v530
          %v532 = vrot.slane %v490, %v531
          %v533 = vlaneseq
          %v534 = vshrl.u32 %v533, 7
          %v535 = vsub.s32 %v512, %v534
          %v536 = vrot.slane %v493, %v535
          %v537 = vlaneseq
          %v538 = vshrl.u32 %v537, 7
          %v539 = vsub.s32 %v512, %v538
          %v540 = vrot.slane %v496, %v539
          %v541 = vlaneseq
          %v542 = vshrl.u32 %v541, 7
          %v543 = vsub.s32 %v512, %v542
          %v544 = vrot.slane %v499, %v543
          %vm545 = vcmask 1041409
          %v546 = vsel %vm545, %v520, %v516
          %vm547 = vcmask 1042434
          %v548 = vsel %vm547, %v524, %v546
          %vm549 = vcmask 1043459
          %v550 = vsel %vm549, %v528, %v548
          %vm551 = vcmask 1044484
          %v552 = vsel %vm551, %v532, %v550
          %vm553 = vcmask 1045509
          %v554 = vsel %vm553, %v536, %v552
          %vm555 = vcmask 1046534
          %v556 = vsel %vm555, %v540, %v554
          %vm557 = vcmask 1047559
          %v558 = vsel %vm557, %v544, %v556
          %vm560 = vcmask 64512
          %v562 = vsel %vm560, %v501, 0
          %v565 = vsel %vm560, %v502, 0
          %567 = vmatprep.subr.mxu0 0.0
          %568 = vmatpush1.msra.mxu0 %v558
          %569 = vmatprep.subr.mxu0 0.0
          %570 = vmatpush1.msra.mxu0 0.0
          %571 = vmatprep.subr.mxu0 0.0
          %572 = vmatpush1.msra.mxu0 0.0
          %573 = vmatprep.subr.mxu0 0.0
          %574 = vmatpush1.msra.mxu0 0.0
          %575 = vmatprep.subr.mxu0 0.0
          %576 = vmatpush1.msra.mxu0 0.0
          %577 = vmatprep.subr.mxu0 0.0
          %578 = vmatpush1.msra.mxu0 0.0
          %579 = vmatprep.subr.mxu0 0.0
          %580 = vmatpush1.msra.mxu0 0.0
          %581 = vmatprep.subr.mxu0 0.0
          %582 = vmatpush1.msra.mxu0 0.0
          %583 = vmatprep.subr.mxu0 0.0
          %584 = vmatpush1.msra.mxu0 0.0
          %585 = vmatprep.subr.mxu0 0.0
          %586 = vmatpush1.msra.mxu0 0.0
          %587 = vmatprep.subr.mxu0 0.0
          %588 = vmatpush1.msra.mxu0 0.0
          %589 = vmatprep.subr.mxu0 0.0
          %590 = vmatpush1.msra.mxu0 0.0
          %591 = vmatprep.subr.mxu0 0.0
          %592 = vmatpush1.msra.mxu0 0.0
          %593 = vmatprep.subr.mxu0 0.0
          %594 = vmatpush1.msra.mxu0 0.0
          %595 = vmatprep.subr.mxu0 0.0
          %596 = vmatpush1.msra.mxu0 0.0
          %597 = vmatprep.subr.mxu0 0.0
          %598 = vmatpush1.msra.mxu0 0.0
          %599 = vmatprep.subr.mxu0 0.0
          %600 = vmatpush1.msra.mxu0 0.0
          %601 = vmatprep.subr.mxu0 0.0
          %602 = vmatpush1.msra.mxu0 0.0
          %603 = vmatprep.subr.mxu0 0.0
          %604 = vmatpush1.msra.mxu0 0.0
          %605 = vmatprep.subr.mxu0 0.0
          %606 = vmatpush1.msra.mxu0 0.0
          %607 = vmatprep.subr.mxu0 0.0
          %608 = vmatpush1.msra.mxu0 0.0
          %609 = vmatprep.subr.mxu0 0.0
          %610 = vmatpush1.msra.mxu0 0.0
          %611 = vmatprep.subr.mxu0 0.0
          %612 = vmatpush1.msra.mxu0 0.0
          %613 = vmatprep.subr.mxu0 0.0
          %614 = vmatpush1.msra.mxu0 0.0
          %615 = vmatprep.subr.mxu0 0.0
          %616 = vmatpush1.msra.mxu0 0.0
          %617 = vmatprep.subr.mxu0 0.0
          %618 = vmatpush1.msra.mxu0 0.0
          %619 = vmatprep.subr.mxu0 0.0
          %620 = vmatpush1.msra.mxu0 0.0
          %621 = vmatprep.subr.mxu0 0.0
          %622 = vmatpush1.msra.mxu0 0.0
          %623 = vmatprep.subr.mxu0 0.0
          %624 = vmatpush1.msra.mxu0 0.0
          %625 = vmatprep.subr.mxu0 0.0
          %626 = vmatpush1.msra.mxu0 0.0
          %627 = vmatprep.subr.mxu0 0.0
          %628 = vmatpush1.msra.mxu0 0.0
          %629 = vmatprep.subr.mxu0 0.0
          %630 = vmatpush1.msra.mxu0 0.0
          %631 = vmatprep.mubr.f32.mxu0 0.0
          %632 = vmatmul.mubr.f32.gmra.mrb[0].mxu0 %v562
          %v633 = vpop.f32.mrb[0].mxu0
          %v634 = vadd.f32 0.0, %v633
          %v635 = vpop.f32.mrb[0].mxu0
          %636 = vmatprep.mubr.f32.mxu0 0.0
          %637 = vmatmul.mubr.f32.gmra.mrb[0].mxu0 %v565
          %v638 = vpop.f32.mrb[0].mxu0
          %v639 = vadd.f32 0.0, %v638
          %v640 = vpop.f32.mrb[0].mxu0
          %641 = vdwg.mxu0
          %v650 = vlaneseq
          %v651 = vshrl.u32 %v650, 7
          %v652 = vsub.s32 %v512, %v651
          %v653 = vrot.slane %v439, %v652
          %v654 = vlaneseq
          %v655 = vshrl.u32 %v654, 7
          %v656 = vsub.s32 %v512, %v655
          %v657 = vrot.slane %v442, %v656
          %v658 = vlaneseq
          %v659 = vshrl.u32 %v658, 7
          %v660 = vsub.s32 %v512, %v659
          %v661 = vrot.slane %v445, %v660
          %v662 = vlaneseq
          %v663 = vshrl.u32 %v662, 7
          %v664 = vsub.s32 %v512, %v663
          %v665 = vrot.slane %v448, %v664
          %v666 = vlaneseq
          %v667 = vshrl.u32 %v666, 7
          %v668 = vsub.s32 %v512, %v667
          %v669 = vrot.slane %v451, %v668
          %v670 = vlaneseq
          %v671 = vshrl.u32 %v670, 7
          %v672 = vsub.s32 %v512, %v671
          %v673 = vrot.slane %v454, %v672
          %v674 = vlaneseq
          %v675 = vshrl.u32 %v674, 7
          %v676 = vsub.s32 %v512, %v675
          %v677 = vrot.slane %v457, %v676
          %v678 = vlaneseq
          %v679 = vshrl.u32 %v678, 7
          %v680 = vsub.s32 %v512, %v679
          %v681 = vrot.slane %v460, %v680
          %v682 = vsel %vm545, %v657, %v653
          %v683 = vsel %vm547, %v661, %v682
          %v684 = vsel %vm549, %v665, %v683
          %v685 = vsel %vm551, %v669, %v684
          %v686 = vsel %vm553, %v673, %v685
          %v687 = vsel %vm555, %v677, %v686
          %v688 = vsel %vm557, %v681, %v687
          %v691 = vsel %vm560, %v461, 0
          %v694 = vsel %vm560, %v462, 0
          %696 = vmatprep.subr.mxu0 0.0
          %697 = vmatpush1.msra.mxu0 %v688
          %698 = vmatprep.subr.mxu0 0.0
          %699 = vmatpush1.msra.mxu0 0.0
          %700 = vmatprep.subr.mxu0 0.0
          %701 = vmatpush1.msra.mxu0 0.0
          %702 = vmatprep.subr.mxu0 0.0
          %703 = vmatpush1.msra.mxu0 0.0
          %704 = vmatprep.subr.mxu0 0.0
          %705 = vmatpush1.msra.mxu0 0.0
          %706 = vmatprep.subr.mxu0 0.0
          %707 = vmatpush1.msra.mxu0 0.0
          %708 = vmatprep.subr.mxu0 0.0
          %709 = vmatpush1.msra.mxu0 0.0
          %710 = vmatprep.subr.mxu0 0.0
          %711 = vmatpush1.msra.mxu0 0.0
          %712 = vmatprep.subr.mxu0 0.0
          %713 = vmatpush1.msra.mxu0 0.0
          %714 = vmatprep.subr.mxu0 0.0
          %715 = vmatpush1.msra.mxu0 0.0
          %716 = vmatprep.subr.mxu0 0.0
          %717 = vmatpush1.msra.mxu0 0.0
          %718 = vmatprep.subr.mxu0 0.0
          %719 = vmatpush1.msra.mxu0 0.0
          %720 = vmatprep.subr.mxu0 0.0
          %721 = vmatpush1.msra.mxu0 0.0
          %722 = vmatprep.subr.mxu0 0.0
          %723 = vmatpush1.msra.mxu0 0.0
          %724 = vmatprep.subr.mxu0 0.0
          %725 = vmatpush1.msra.mxu0 0.0
          %726 = vmatprep.subr.mxu0 0.0
          %727 = vmatpush1.msra.mxu0 0.0
          %728 = vmatprep.subr.mxu0 0.0
          %729 = vmatpush1.msra.mxu0 0.0
          %730 = vmatprep.subr.mxu0 0.0
          %731 = vmatpush1.msra.mxu0 0.0
          %732 = vmatprep.subr.mxu0 0.0
          %733 = vmatpush1.msra.mxu0 0.0
          %734 = vmatprep.subr.mxu0 0.0
          %735 = vmatpush1.msra.mxu0 0.0
          %736 = vmatprep.subr.mxu0 0.0
          %737 = vmatpush1.msra.mxu0 0.0
          %738 = vmatprep.subr.mxu0 0.0
          %739 = vmatpush1.msra.mxu0 0.0
          %740 = vmatprep.subr.mxu0 0.0
          %741 = vmatpush1.msra.mxu0 0.0
          %742 = vmatprep.subr.mxu0 0.0
          %743 = vmatpush1.msra.mxu0 0.0
          %744 = vmatprep.subr.mxu0 0.0
          %745 = vmatpush1.msra.mxu0 0.0
          %746 = vmatprep.subr.mxu0 0.0
          %747 = vmatpush1.msra.mxu0 0.0
          %748 = vmatprep.subr.mxu0 0.0
          %749 = vmatpush1.msra.mxu0 0.0
          %750 = vmatprep.subr.mxu0 0.0
          %751 = vmatpush1.msra.mxu0 0.0
          %752 = vmatprep.subr.mxu0 0.0
          %753 = vmatpush1.msra.mxu0 0.0
          %754 = vmatprep.subr.mxu0 0.0
          %755 = vmatpush1.msra.mxu0 0.0
          %756 = vmatprep.subr.mxu0 0.0
          %757 = vmatpush1.msra.mxu0 0.0
          %758 = vmatprep.subr.mxu0 0.0
          %759 = vmatpush1.msra.mxu0 0.0
          %760 = vmatprep.mubr.f32.mxu0 0.0
          %761 = vmatmul.mubr.f32.gmra.mrb[0].mxu0 %v691
          %v762 = vpop.f32.mrb[0].mxu0
          %v763 = vadd.f32 %v634, %v762
          %v764 = vpop.f32.mrb[0].mxu0
          %765 = vmatprep.mubr.f32.mxu0 0.0
          %766 = vmatmul.mubr.f32.gmra.mrb[0].mxu0 %v694
          %v767 = vpop.f32.mrb[0].mxu0
          %v768 = vadd.f32 %v639, %v767
          %v769 = vpop.f32.mrb[0].mxu0
          %770 = vdwg.mxu0
          %v771 = vld [vmem:[%s2 + $0x6] sm:$0x1]
          %v772 = vlaneseq
          %v773 = vshrl.u32 %v772, 7
          %v774 = vsub.s32 0, %v773
          %v775 = vrot.slane %v771, %v774
          %v776 = vmul.f32 %v415, %v775
          %v777 = vmul.f32 %v416, %v775
          %v778 = vmul.f32 %v417, %v775
          %v779 = vmul.f32 %v418, %v775
          %v780 = vmul.f32 %v419, %v775
          %v781 = vmul.f32 %v420, %v775
          %v782 = vmul.f32 %v421, %v775
          %v783 = vmul.f32 %v422, %v775
          %v784 = vsel %vm436, %v776, 0.0
          %785 = vadd.xlane.f32.xlu0 %v784
          %v786 = vpop.xlane.xlu0 %785
          %v787 = vsel %vm436, %v777, 0.0
          %788 = vadd.xlane.f32.xlu0 %v787
          %v789 = vpop.xlane.xlu0 %788
          %v790 = vsel %vm436, %v778, 0.0
          %791 = vadd.xlane.f32.xlu0 %v790
          %v792 = vpop.xlane.xlu0 %791
          %v793 = vsel %vm436, %v779, 0.0
          %794 = vadd.xlane.f32.xlu0 %v793
          %v795 = vpop.xlane.xlu0 %794
          %v796 = vsel %vm436, %v780, 0.0
          %797 = vadd.xlane.f32.xlu0 %v796
          %v798 = vpop.xlane.xlu0 %797
          %v799 = vsel %vm436, %v781, 0.0
          %800 = vadd.xlane.f32.xlu0 %v799
          %v801 = vpop.xlane.xlu0 %800
          %v802 = vsel %vm436, %v782, 0.0
          %803 = vadd.xlane.f32.xlu0 %v802
          %v804 = vpop.xlane.xlu0 %803
          %v805 = vsel %vm436, %v783, 0.0
          %806 = vadd.xlane.f32.xlu0 %v805
          %v807 = vpop.xlane.xlu0 %806
          %s808 = scalar_lea.vmem %s4, 32
          %v809 = vld [vmem:[%s808] sm:$0xff]
          %v810 = vld [vmem:[%s808 + $0x8] sm:$0xff]
          %v819 = vlaneseq
          %v820 = vshrl.u32 %v819, 7
          %v821 = vsub.s32 %v512, %v820
          %v822 = vrot.slane %v786, %v821
          %v823 = vlaneseq
          %v824 = vshrl.u32 %v823, 7
          %v825 = vsub.s32 %v512, %v824
          %v826 = vrot.slane %v789, %v825
          %v827 = vlaneseq
          %v828 = vshrl.u32 %v827, 7
          %v829 = vsub.s32 %v512, %v828
          %v830 = vrot.slane %v792, %v829
          %v831 = vlaneseq
          %v832 = vshrl.u32 %v831, 7
          %v833 = vsub.s32 %v512, %v832
          %v834 = vrot.slane %v795, %v833
          %v835 = vlaneseq
          %v836 = vshrl.u32 %v835, 7
          %v837 = vsub.s32 %v512, %v836
          %v838 = vrot.slane %v798, %v837
          %v839 = vlaneseq
          %v840 = vshrl.u32 %v839, 7
          %v841 = vsub.s32 %v512, %v840
          %v842 = vrot.slane %v801, %v841
          %v843 = vlaneseq
          %v844 = vshrl.u32 %v843, 7
          %v845 = vsub.s32 %v512, %v844
          %v846 = vrot.slane %v804, %v845
          %v847 = vlaneseq
          %v848 = vshrl.u32 %v847, 7
          %v849 = vsub.s32 %v512, %v848
          %v850 = vrot.slane %v807, %v849
          %v851 = vsel %vm545, %v826, %v822
          %v852 = vsel %vm547, %v830, %v851
          %v853 = vsel %vm549, %v834, %v852
          %v854 = vsel %vm551, %v838, %v853
          %v855 = vsel %vm553, %v842, %v854
          %v856 = vsel %vm555, %v846, %v855
          %v857 = vsel %vm557, %v850, %v856
          %v860 = vsel %vm560, %v809, 0
          %v863 = vsel %vm560, %v810, 0
          %865 = vmatprep.subr.mxu0 0.0
          %866 = vmatpush1.msra.mxu0 %v857
          %867 = vmatprep.subr.mxu0 0.0
          %868 = vmatpush1.msra.mxu0 0.0
          %869 = vmatprep.subr.mxu0 0.0
          %870 = vmatpush1.msra.mxu0 0.0
          %871 = vmatprep.subr.mxu0 0.0
          %872 = vmatpush1.msra.mxu0 0.0
          %873 = vmatprep.subr.mxu0 0.0
          %874 = vmatpush1.msra.mxu0 0.0
          %875 = vmatprep.subr.mxu0 0.0
          %876 = vmatpush1.msra.mxu0 0.0
          %877 = vmatprep.subr.mxu0 0.0
          %878 = vmatpush1.msra.mxu0 0.0
          %879 = vmatprep.subr.mxu0 0.0
          %880 = vmatpush1.msra.mxu0 0.0
          %881 = vmatprep.subr.mxu0 0.0
          %882 = vmatpush1.msra.mxu0 0.0
          %883 = vmatprep.subr.mxu0 0.0
          %884 = vmatpush1.msra.mxu0 0.0
          %885 = vmatprep.subr.mxu0 0.0
          %886 = vmatpush1.msra.mxu0 0.0
          %887 = vmatprep.subr.mxu0 0.0
          %888 = vmatpush1.msra.mxu0 0.0
          %889 = vmatprep.subr.mxu0 0.0
          %890 = vmatpush1.msra.mxu0 0.0
          %891 = vmatprep.subr.mxu0 0.0
          %892 = vmatpush1.msra.mxu0 0.0
          %893 = vmatprep.subr.mxu0 0.0
          %894 = vmatpush1.msra.mxu0 0.0
          %895 = vmatprep.subr.mxu0 0.0
          %896 = vmatpush1.msra.mxu0 0.0
          %897 = vmatprep.subr.mxu0 0.0
          %898 = vmatpush1.msra.mxu0 0.0
          %899 = vmatprep.subr.mxu0 0.0
          %900 = vmatpush1.msra.mxu0 0.0
          %901 = vmatprep.subr.mxu0 0.0
          %902 = vmatpush1.msra.mxu0 0.0
          %903 = vmatprep.subr.mxu0 0.0
          %904 = vmatpush1.msra.mxu0 0.0
          %905 = vmatprep.subr.mxu0 0.0
          %906 = vmatpush1.msra.mxu0 0.0
          %907 = vmatprep.subr.mxu0 0.0
          %908 = vmatpush1.msra.mxu0 0.0
          %909 = vmatprep.subr.mxu0 0.0
          %910 = vmatpush1.msra.mxu0 0.0
          %911 = vmatprep.subr.mxu0 0.0
          %912 = vmatpush1.msra.mxu0 0.0
          %913 = vmatprep.subr.mxu0 0.0
          %914 = vmatpush1.msra.mxu0 0.0
          %915 = vmatprep.subr.mxu0 0.0
          %916 = vmatpush1.msra.mxu0 0.0
          %917 = vmatprep.subr.mxu0 0.0
          %918 = vmatpush1.msra.mxu0 0.0
          %919 = vmatprep.subr.mxu0 0.0
          %920 = vmatpush1.msra.mxu0 0.0
          %921 = vmatprep.subr.mxu0 0.0
          %922 = vmatpush1.msra.mxu0 0.0
          %923 = vmatprep.subr.mxu0 0.0
          %924 = vmatpush1.msra.mxu0 0.0
          %925 = vmatprep.subr.mxu0 0.0
          %926 = vmatpush1.msra.mxu0 0.0
          %927 = vmatprep.subr.mxu0 0.0
          %928 = vmatpush1.msra.mxu0 0.0
          %929 = vmatprep.mubr.f32.mxu0 0.0
          %930 = vmatmul.mubr.f32.gmra.mrb[0].mxu0 %v860
          %v931 = vpop.f32.mrb[0].mxu0
          %v932 = vadd.f32 0.0, %v931
          %v933 = vpop.f32.mrb[0].mxu0
          %934 = vmatprep.mubr.f32.mxu0 0.0
          %935 = vmatmul.mubr.f32.gmra.mrb[0].mxu0 %v863
          %v936 = vpop.f32.mrb[0].mxu0
          %v937 = vadd.f32 0.0, %v936
          %v938 = vpop.f32.mrb[0].mxu0
          %939 = vdwg.mxu0
          %v940 = vadd.f32 %v763, %v932
          %v941 = vadd.f32 %v768, %v937
          %v942 = vld [vmem:[%s5] sm:$0xff]
          %v943 = vld [vmem:[%s2 + $0x1] sm:$0x1]
          %v944 = vlaneseq
          %v945 = vshrl.u32 %v944, 7
          %v946 = vsub.s32 0, %v945
          %v947 = vrot.slane %v943, %v946
          %v948 = vmul.f32 %v415, %v947
          %v949 = vmul.f32 %v416, %v947
          %v950 = vmul.f32 %v417, %v947
          %v951 = vmul.f32 %v418, %v947
          %v952 = vmul.f32 %v419, %v947
          %v953 = vmul.f32 %v420, %v947
          %v954 = vmul.f32 %v421, %v947
          %v955 = vmul.f32 %v422, %v947
          %v956 = vsel %vm436, %v948, 0.0
          %957 = vadd.xlane.f32.xlu0 %v956
          %v958 = vpop.xlane.xlu0 %957
          %v959 = vsel %vm436, %v949, 0.0
          %960 = vadd.xlane.f32.xlu0 %v959
          %v961 = vpop.xlane.xlu0 %960
          %v962 = vsel %vm436, %v950, 0.0
          %963 = vadd.xlane.f32.xlu0 %v962
          %v964 = vpop.xlane.xlu0 %963
          %v965 = vsel %vm436, %v951, 0.0
          %966 = vadd.xlane.f32.xlu0 %v965
          %v967 = vpop.xlane.xlu0 %966
          %v968 = vsel %vm436, %v952, 0.0
          %969 = vadd.xlane.f32.xlu0 %v968
          %v970 = vpop.xlane.xlu0 %969
          %v971 = vsel %vm436, %v953, 0.0
          %972 = vadd.xlane.f32.xlu0 %v971
          %v973 = vpop.xlane.xlu0 %972
          %v974 = vsel %vm436, %v954, 0.0
          %975 = vadd.xlane.f32.xlu0 %v974
          %v976 = vpop.xlane.xlu0 %975
          %v977 = vsel %vm436, %v955, 0.0
          %978 = vadd.xlane.f32.xlu0 %v977
          %v979 = vpop.xlane.xlu0 %978
          %v980 = vld [vmem:[%s2 + $0x4] sm:$0x1]
          %v981 = vlaneseq
          %v982 = vshrl.u32 %v981, 7
          %v983 = vsub.s32 0, %v982
          %v984 = vrot.slane %v980, %v983
          %v985 = vmul.f32 %v415, %v984
          %v986 = vmul.f32 %v416, %v984
          %v987 = vmul.f32 %v417, %v984
          %v988 = vmul.f32 %v418, %v984
          %v989 = vmul.f32 %v419, %v984
          %v990 = vmul.f32 %v420, %v984
          %v991 = vmul.f32 %v421, %v984
          %v992 = vmul.f32 %v422, %v984
          %v993 = vsel %vm436, %v985, 0.0
          %994 = vadd.xlane.f32.xlu0 %v993
          %v995 = vpop.xlane.xlu0 %994
          %v996 = vsel %vm436, %v986, 0.0
          %997 = vadd.xlane.f32.xlu0 %v996
          %v998 = vpop.xlane.xlu0 %997
          %v999 = vsel %vm436, %v987, 0.0
          %1000 = vadd.xlane.f32.xlu0 %v999
          %v1001 = vpop.xlane.xlu0 %1000
          %v1002 = vsel %vm436, %v988, 0.0
          %1003 = vadd.xlane.f32.xlu0 %v1002
          %v1004 = vpop.xlane.xlu0 %1003
          %v1005 = vsel %vm436, %v989, 0.0
          %1006 = vadd.xlane.f32.xlu0 %v1005
          %v1007 = vpop.xlane.xlu0 %1006
          %v1008 = vsel %vm436, %v990, 0.0
          %1009 = vadd.xlane.f32.xlu0 %v1008
          %v1010 = vpop.xlane.xlu0 %1009
          %v1011 = vsel %vm436, %v991, 0.0
          %1012 = vadd.xlane.f32.xlu0 %v1011
          %v1013 = vpop.xlane.xlu0 %1012
          %v1014 = vsel %vm436, %v992, 0.0
          %1015 = vadd.xlane.f32.xlu0 %v1014
          %v1016 = vpop.xlane.xlu0 %1015
          %v1025 = vlaneseq
          %v1026 = vshrl.u32 %v1025, 7
          %v1027 = vsub.s32 %v512, %v1026
          %v1028 = vrot.slane %v995, %v1027
          %v1029 = vlaneseq
          %v1030 = vshrl.u32 %v1029, 7
          %v1031 = vsub.s32 %v512, %v1030
          %v1032 = vrot.slane %v998, %v1031
          %v1033 = vlaneseq
          %v1034 = vshrl.u32 %v1033, 7
          %v1035 = vsub.s32 %v512, %v1034
          %v1036 = vrot.slane %v1001, %v1035
          %v1037 = vlaneseq
          %v1038 = vshrl.u32 %v1037, 7
          %v1039 = vsub.s32 %v512, %v1038
          %v1040 = vrot.slane %v1004, %v1039
          %v1041 = vlaneseq
          %v1042 = vshrl.u32 %v1041, 7
          %v1043 = vsub.s32 %v512, %v1042
          %v1044 = vrot.slane %v1007, %v1043
          %v1045 = vlaneseq
          %v1046 = vshrl.u32 %v1045, 7
          %v1047 = vsub.s32 %v512, %v1046
          %v1048 = vrot.slane %v1010, %v1047
          %v1049 = vlaneseq
          %v1050 = vshrl.u32 %v1049, 7
          %v1051 = vsub.s32 %v512, %v1050
          %v1052 = vrot.slane %v1013, %v1051
          %v1053 = vlaneseq
          %v1054 = vshrl.u32 %v1053, 7
          %v1055 = vsub.s32 %v512, %v1054
          %v1056 = vrot.slane %v1016, %v1055
          %v1057 = vsel %vm545, %v1032, %v1028
          %v1058 = vsel %vm547, %v1036, %v1057
          %v1059 = vsel %vm549, %v1040, %v1058
          %v1060 = vsel %vm551, %v1044, %v1059
          %v1061 = vsel %vm553, %v1048, %v1060
          %v1062 = vsel %vm555, %v1052, %v1061
          %v1063 = vsel %vm557, %v1056, %v1062
          %1065 = vmatprep.subr.mxu0 0.0
          %1066 = vmatpush1.msra.mxu0 %v1063
          %1067 = vmatprep.subr.mxu0 0.0
          %1068 = vmatpush1.msra.mxu0 0.0
          %1069 = vmatprep.subr.mxu0 0.0
          %1070 = vmatpush1.msra.mxu0 0.0
          %1071 = vmatprep.subr.mxu0 0.0
          %1072 = vmatpush1.msra.mxu0 0.0
          %1073 = vmatprep.subr.mxu0 0.0
          %1074 = vmatpush1.msra.mxu0 0.0
          %1075 = vmatprep.subr.mxu0 0.0
          %1076 = vmatpush1.msra.mxu0 0.0
          %1077 = vmatprep.subr.mxu0 0.0
          %1078 = vmatpush1.msra.mxu0 0.0
          %1079 = vmatprep.subr.mxu0 0.0
          %1080 = vmatpush1.msra.mxu0 0.0
          %1081 = vmatprep.subr.mxu0 0.0
          %1082 = vmatpush1.msra.mxu0 0.0
          %1083 = vmatprep.subr.mxu0 0.0
          %1084 = vmatpush1.msra.mxu0 0.0
          %1085 = vmatprep.subr.mxu0 0.0
          %1086 = vmatpush1.msra.mxu0 0.0
          %1087 = vmatprep.subr.mxu0 0.0
          %1088 = vmatpush1.msra.mxu0 0.0
          %1089 = vmatprep.subr.mxu0 0.0
          %1090 = vmatpush1.msra.mxu0 0.0
          %1091 = vmatprep.subr.mxu0 0.0
          %1092 = vmatpush1.msra.mxu0 0.0
          %1093 = vmatprep.subr.mxu0 0.0
          %1094 = vmatpush1.msra.mxu0 0.0
          %1095 = vmatprep.subr.mxu0 0.0
          %1096 = vmatpush1.msra.mxu0 0.0
          %1097 = vmatprep.subr.mxu0 0.0
          %1098 = vmatpush1.msra.mxu0 0.0
          %1099 = vmatprep.subr.mxu0 0.0
          %1100 = vmatpush1.msra.mxu0 0.0
          %1101 = vmatprep.subr.mxu0 0.0
          %1102 = vmatpush1.msra.mxu0 0.0
          %1103 = vmatprep.subr.mxu0 0.0
          %1104 = vmatpush1.msra.mxu0 0.0
          %1105 = vmatprep.subr.mxu0 0.0
          %1106 = vmatpush1.msra.mxu0 0.0
          %1107 = vmatprep.subr.mxu0 0.0
          %1108 = vmatpush1.msra.mxu0 0.0
          %1109 = vmatprep.subr.mxu0 0.0
          %1110 = vmatpush1.msra.mxu0 0.0
          %1111 = vmatprep.subr.mxu0 0.0
          %1112 = vmatpush1.msra.mxu0 0.0
          %1113 = vmatprep.subr.mxu0 0.0
          %1114 = vmatpush1.msra.mxu0 0.0
          %1115 = vmatprep.subr.mxu0 0.0
          %1116 = vmatpush1.msra.mxu0 0.0
          %1117 = vmatprep.subr.mxu0 0.0
          %1118 = vmatpush1.msra.mxu0 0.0
          %1119 = vmatprep.subr.mxu0 0.0
          %1120 = vmatpush1.msra.mxu0 0.0
          %1121 = vmatprep.subr.mxu0 0.0
          %1122 = vmatpush1.msra.mxu0 0.0
          %1123 = vmatprep.subr.mxu0 0.0
          %1124 = vmatpush1.msra.mxu0 0.0
          %1125 = vmatprep.subr.mxu0 0.0
          %1126 = vmatpush1.msra.mxu0 0.0
          %1127 = vmatprep.subr.mxu0 0.0
          %1128 = vmatpush1.msra.mxu0 0.0
          %1129 = vmatprep.mubr.f32.mxu0 0.0
          %1130 = vmatmul.mubr.f32.gmra.mrb[0].mxu0 %v562
          %v1131 = vpop.f32.mrb[0].mxu0
          %v1132 = vadd.f32 0.0, %v1131
          %v1133 = vpop.f32.mrb[0].mxu0
          %1134 = vmatprep.mubr.f32.mxu0 0.0
          %1135 = vmatmul.mubr.f32.gmra.mrb[0].mxu0 %v565
          %v1136 = vpop.f32.mrb[0].mxu0
          %v1137 = vadd.f32 0.0, %v1136
          %v1138 = vpop.f32.mrb[0].mxu0
          %1139 = vdwg.mxu0
          %v1148 = vlaneseq
          %v1149 = vshrl.u32 %v1148, 7
          %v1150 = vsub.s32 %v512, %v1149
          %v1151 = vrot.slane %v958, %v1150
          %v1152 = vlaneseq
          %v1153 = vshrl.u32 %v1152, 7
          %v1154 = vsub.s32 %v512, %v1153
          %v1155 = vrot.slane %v961, %v1154
          %v1156 = vlaneseq
          %v1157 = vshrl.u32 %v1156, 7
          %v1158 = vsub.s32 %v512, %v1157
          %v1159 = vrot.slane %v964, %v1158
          %v1160 = vlaneseq
          %v1161 = vshrl.u32 %v1160, 7
          %v1162 = vsub.s32 %v512, %v1161
          %v1163 = vrot.slane %v967, %v1162
          %v1164 = vlaneseq
          %v1165 = vshrl.u32 %v1164, 7
          %v1166 = vsub.s32 %v512, %v1165
          %v1167 = vrot.slane %v970, %v1166
          %v1168 = vlaneseq
          %v1169 = vshrl.u32 %v1168, 7
          %v1170 = vsub.s32 %v512, %v1169
          %v1171 = vrot.slane %v973, %v1170
          %v1172 = vlaneseq
          %v1173 = vshrl.u32 %v1172, 7
          %v1174 = vsub.s32 %v512, %v1173
          %v1175 = vrot.slane %v976, %v1174
          %v1176 = vlaneseq
          %v1177 = vshrl.u32 %v1176, 7
          %v1178 = vsub.s32 %v512, %v1177
          %v1179 = vrot.slane %v979, %v1178
          %v1180 = vsel %vm545, %v1155, %v1151
          %v1181 = vsel %vm547, %v1159, %v1180
          %v1182 = vsel %vm549, %v1163, %v1181
          %v1183 = vsel %vm551, %v1167, %v1182
          %v1184 = vsel %vm553, %v1171, %v1183
          %v1185 = vsel %vm555, %v1175, %v1184
          %v1186 = vsel %vm557, %v1179, %v1185
          %1188 = vmatprep.subr.mxu0 0.0
          %1189 = vmatpush1.msra.mxu0 %v1186
          %1190 = vmatprep.subr.mxu0 0.0
          %1191 = vmatpush1.msra.mxu0 0.0
          %1192 = vmatprep.subr.mxu0 0.0
          %1193 = vmatpush1.msra.mxu0 0.0
          %1194 = vmatprep.subr.mxu0 0.0
          %1195 = vmatpush1.msra.mxu0 0.0
          %1196 = vmatprep.subr.mxu0 0.0
          %1197 = vmatpush1.msra.mxu0 0.0
          %1198 = vmatprep.subr.mxu0 0.0
          %1199 = vmatpush1.msra.mxu0 0.0
          %1200 = vmatprep.subr.mxu0 0.0
          %1201 = vmatpush1.msra.mxu0 0.0
          %1202 = vmatprep.subr.mxu0 0.0
          %1203 = vmatpush1.msra.mxu0 0.0
          %1204 = vmatprep.subr.mxu0 0.0
          %1205 = vmatpush1.msra.mxu0 0.0
          %1206 = vmatprep.subr.mxu0 0.0
          %1207 = vmatpush1.msra.mxu0 0.0
          %1208 = vmatprep.subr.mxu0 0.0
          %1209 = vmatpush1.msra.mxu0 0.0
          %1210 = vmatprep.subr.mxu0 0.0
          %1211 = vmatpush1.msra.mxu0 0.0
          %1212 = vmatprep.subr.mxu0 0.0
          %1213 = vmatpush1.msra.mxu0 0.0
          %1214 = vmatprep.subr.mxu0 0.0
          %1215 = vmatpush1.msra.mxu0 0.0
          %1216 = vmatprep.subr.mxu0 0.0
          %1217 = vmatpush1.msra.mxu0 0.0
          %1218 = vmatprep.subr.mxu0 0.0
          %1219 = vmatpush1.msra.mxu0 0.0
          %1220 = vmatprep.subr.mxu0 0.0
          %1221 = vmatpush1.msra.mxu0 0.0
          %1222 = vmatprep.subr.mxu0 0.0
          %1223 = vmatpush1.msra.mxu0 0.0
          %1224 = vmatprep.subr.mxu0 0.0
          %1225 = vmatpush1.msra.mxu0 0.0
          %1226 = vmatprep.subr.mxu0 0.0
          %1227 = vmatpush1.msra.mxu0 0.0
          %1228 = vmatprep.subr.mxu0 0.0
          %1229 = vmatpush1.msra.mxu0 0.0
          %1230 = vmatprep.subr.mxu0 0.0
          %1231 = vmatpush1.msra.mxu0 0.0
          %1232 = vmatprep.subr.mxu0 0.0
          %1233 = vmatpush1.msra.mxu0 0.0
          %1234 = vmatprep.subr.mxu0 0.0
          %1235 = vmatpush1.msra.mxu0 0.0
          %1236 = vmatprep.subr.mxu0 0.0
          %1237 = vmatpush1.msra.mxu0 0.0
          %1238 = vmatprep.subr.mxu0 0.0
          %1239 = vmatpush1.msra.mxu0 0.0
          %1240 = vmatprep.subr.mxu0 0.0
          %1241 = vmatpush1.msra.mxu0 0.0
          %1242 = vmatprep.subr.mxu0 0.0
          %1243 = vmatpush1.msra.mxu0 0.0
          %1244 = vmatprep.subr.mxu0 0.0
          %1245 = vmatpush1.msra.mxu0 0.0
          %1246 = vmatprep.subr.mxu0 0.0
          %1247 = vmatpush1.msra.mxu0 0.0
          %1248 = vmatprep.subr.mxu0 0.0
          %1249 = vmatpush1.msra.mxu0 0.0
          %1250 = vmatprep.subr.mxu0 0.0
          %1251 = vmatpush1.msra.mxu0 0.0
          %1252 = vmatprep.mubr.f32.mxu0 0.0
          %1253 = vmatmul.mubr.f32.gmra.mrb[0].mxu0 %v691
          %v1254 = vpop.f32.mrb[0].mxu0
          %v1255 = vadd.f32 %v1132, %v1254
          %v1256 = vpop.f32.mrb[0].mxu0
          %1257 = vmatprep.mubr.f32.mxu0 0.0
          %1258 = vmatmul.mubr.f32.gmra.mrb[0].mxu0 %v694
          %v1259 = vpop.f32.mrb[0].mxu0
          %v1260 = vadd.f32 %v1137, %v1259
          %v1261 = vpop.f32.mrb[0].mxu0
          %1262 = vdwg.mxu0
          %v1263 = vld [vmem:[%s2 + $0x7] sm:$0x1]
          %v1264 = vlaneseq
          %v1265 = vshrl.u32 %v1264, 7
          %v1266 = vsub.s32 0, %v1265
          %v1267 = vrot.slane %v1263, %v1266
          %v1268 = vmul.f32 %v415, %v1267
          %v1269 = vmul.f32 %v416, %v1267
          %v1270 = vmul.f32 %v417, %v1267
          %v1271 = vmul.f32 %v418, %v1267
          %v1272 = vmul.f32 %v419, %v1267
          %v1273 = vmul.f32 %v420, %v1267
          %v1274 = vmul.f32 %v421, %v1267
          %v1275 = vmul.f32 %v422, %v1267
          %v1276 = vsel %vm436, %v1268, 0.0
          %1277 = vadd.xlane.f32.xlu0 %v1276
          %v1278 = vpop.xlane.xlu0 %1277
          %v1279 = vsel %vm436, %v1269, 0.0
          %1280 = vadd.xlane.f32.xlu0 %v1279
          %v1281 = vpop.xlane.xlu0 %1280
          %v1282 = vsel %vm436, %v1270, 0.0
          %1283 = vadd.xlane.f32.xlu0 %v1282
          %v1284 = vpop.xlane.xlu0 %1283
          %v1285 = vsel %vm436, %v1271, 0.0
          %1286 = vadd.xlane.f32.xlu0 %v1285
          %v1287 = vpop.xlane.xlu0 %1286
          %v1288 = vsel %vm436, %v1272, 0.0
          %1289 = vadd.xlane.f32.xlu0 %v1288
          %v1290 = vpop.xlane.xlu0 %1289
          %v1291 = vsel %vm436, %v1273, 0.0
          %1292 = vadd.xlane.f32.xlu0 %v1291
          %v1293 = vpop.xlane.xlu0 %1292
          %v1294 = vsel %vm436, %v1274, 0.0
          %1295 = vadd.xlane.f32.xlu0 %v1294
          %v1296 = vpop.xlane.xlu0 %1295
          %v1297 = vsel %vm436, %v1275, 0.0
          %1298 = vadd.xlane.f32.xlu0 %v1297
          %v1299 = vpop.xlane.xlu0 %1298
          %v1308 = vlaneseq
          %v1309 = vshrl.u32 %v1308, 7
          %v1310 = vsub.s32 %v512, %v1309
          %v1311 = vrot.slane %v1278, %v1310
          %v1312 = vlaneseq
          %v1313 = vshrl.u32 %v1312, 7
          %v1314 = vsub.s32 %v512, %v1313
          %v1315 = vrot.slane %v1281, %v1314
          %v1316 = vlaneseq
          %v1317 = vshrl.u32 %v1316, 7
          %v1318 = vsub.s32 %v512, %v1317
          %v1319 = vrot.slane %v1284, %v1318
          %v1320 = vlaneseq
          %v1321 = vshrl.u32 %v1320, 7
          %v1322 = vsub.s32 %v512, %v1321
          %v1323 = vrot.slane %v1287, %v1322
          %v1324 = vlaneseq
          %v1325 = vshrl.u32 %v1324, 7
          %v1326 = vsub.s32 %v512, %v1325
          %v1327 = vrot.slane %v1290, %v1326
          %v1328 = vlaneseq
          %v1329 = vshrl.u32 %v1328, 7
          %v1330 = vsub.s32 %v512, %v1329
          %v1331 = vrot.slane %v1293, %v1330
          %v1332 = vlaneseq
          %v1333 = vshrl.u32 %v1332, 7
          %v1334 = vsub.s32 %v512, %v1333
          %v1335 = vrot.slane %v1296, %v1334
          %v1336 = vlaneseq
          %v1337 = vshrl.u32 %v1336, 7
          %v1338 = vsub.s32 %v512, %v1337
          %v1339 = vrot.slane %v1299, %v1338
          %v1340 = vsel %vm545, %v1315, %v1311
          %v1341 = vsel %vm547, %v1319, %v1340
          %v1342 = vsel %vm549, %v1323, %v1341
          %v1343 = vsel %vm551, %v1327, %v1342
          %v1344 = vsel %vm553, %v1331, %v1343
          %v1345 = vsel %vm555, %v1335, %v1344
          %v1346 = vsel %vm557, %v1339, %v1345
          %1348 = vmatprep.subr.mxu0 0.0
          %1349 = vmatpush1.msra.mxu0 %v1346
          %1350 = vmatprep.subr.mxu0 0.0
          %1351 = vmatpush1.msra.mxu0 0.0
          %1352 = vmatprep.subr.mxu0 0.0
          %1353 = vmatpush1.msra.mxu0 0.0
          %1354 = vmatprep.subr.mxu0 0.0
          %1355 = vmatpush1.msra.mxu0 0.0
          %1356 = vmatprep.subr.mxu0 0.0
          %1357 = vmatpush1.msra.mxu0 0.0
          %1358 = vmatprep.subr.mxu0 0.0
          %1359 = vmatpush1.msra.mxu0 0.0
          %1360 = vmatprep.subr.mxu0 0.0
          %1361 = vmatpush1.msra.mxu0 0.0
          %1362 = vmatprep.subr.mxu0 0.0
          %1363 = vmatpush1.msra.mxu0 0.0
          %1364 = vmatprep.subr.mxu0 0.0
          %1365 = vmatpush1.msra.mxu0 0.0
          %1366 = vmatprep.subr.mxu0 0.0
          %1367 = vmatpush1.msra.mxu0 0.0
          %1368 = vmatprep.subr.mxu0 0.0
          %1369 = vmatpush1.msra.mxu0 0.0
          %1370 = vmatprep.subr.mxu0 0.0
          %1371 = vmatpush1.msra.mxu0 0.0
          %1372 = vmatprep.subr.mxu0 0.0
          %1373 = vmatpush1.msra.mxu0 0.0
          %1374 = vmatprep.subr.mxu0 0.0
          %1375 = vmatpush1.msra.mxu0 0.0
          %1376 = vmatprep.subr.mxu0 0.0
          %1377 = vmatpush1.msra.mxu0 0.0
          %1378 = vmatprep.subr.mxu0 0.0
          %1379 = vmatpush1.msra.mxu0 0.0
          %1380 = vmatprep.subr.mxu0 0.0
          %1381 = vmatpush1.msra.mxu0 0.0
          %1382 = vmatprep.subr.mxu0 0.0
          %1383 = vmatpush1.msra.mxu0 0.0
          %1384 = vmatprep.subr.mxu0 0.0
          %1385 = vmatpush1.msra.mxu0 0.0
          %1386 = vmatprep.subr.mxu0 0.0
          %1387 = vmatpush1.msra.mxu0 0.0
          %1388 = vmatprep.subr.mxu0 0.0
          %1389 = vmatpush1.msra.mxu0 0.0
          %1390 = vmatprep.subr.mxu0 0.0
          %1391 = vmatpush1.msra.mxu0 0.0
          %1392 = vmatprep.subr.mxu0 0.0
          %1393 = vmatpush1.msra.mxu0 0.0
          %1394 = vmatprep.subr.mxu0 0.0
          %1395 = vmatpush1.msra.mxu0 0.0
          %1396 = vmatprep.subr.mxu0 0.0
          %1397 = vmatpush1.msra.mxu0 0.0
          %1398 = vmatprep.subr.mxu0 0.0
          %1399 = vmatpush1.msra.mxu0 0.0
          %1400 = vmatprep.subr.mxu0 0.0
          %1401 = vmatpush1.msra.mxu0 0.0
          %1402 = vmatprep.subr.mxu0 0.0
          %1403 = vmatpush1.msra.mxu0 0.0
          %1404 = vmatprep.subr.mxu0 0.0
          %1405 = vmatpush1.msra.mxu0 0.0
          %1406 = vmatprep.subr.mxu0 0.0
          %1407 = vmatpush1.msra.mxu0 0.0
          %1408 = vmatprep.subr.mxu0 0.0
          %1409 = vmatpush1.msra.mxu0 0.0
          %1410 = vmatprep.subr.mxu0 0.0
          %1411 = vmatpush1.msra.mxu0 0.0
          %1412 = vmatprep.mubr.f32.mxu0 0.0
          %1413 = vmatmul.mubr.f32.gmra.mrb[0].mxu0 %v860
          %v1414 = vpop.f32.mrb[0].mxu0
          %v1415 = vadd.f32 0.0, %v1414
          %v1416 = vpop.f32.mrb[0].mxu0
          %1417 = vmatprep.mubr.f32.mxu0 0.0
          %1418 = vmatmul.mubr.f32.gmra.mrb[0].mxu0 %v863
          %v1419 = vpop.f32.mrb[0].mxu0
          %v1420 = vadd.f32 0.0, %v1419
          %v1421 = vpop.f32.mrb[0].mxu0
          %1422 = vdwg.mxu0
          %v1423 = vadd.f32 %v1255, %v1415
          %v1424 = vadd.f32 %v1260, %v1420
          %s1425 = scalar_lea.vmem %s5, 8
          %v1426 = vld [vmem:[%s1425] sm:$0xff]
          %v1428 = vsel %vm560, %v1423, 0
          %v1431 = vsel %vm560, %v1424, 0
          %1433 = vmatprep.subr.mxu0 0.0
          %1434 = vmatpush1.msra.mxu0 %v1426
          %1435 = vmatprep.subr.mxu0 0.0
          %1436 = vmatpush1.msra.mxu0 0.0
          %1437 = vmatprep.subr.mxu0 0.0
          %1438 = vmatpush1.msra.mxu0 0.0
          %1439 = vmatprep.subr.mxu0 0.0
          %1440 = vmatpush1.msra.mxu0 0.0
          %1441 = vmatprep.subr.mxu0 0.0
          %1442 = vmatpush1.msra.mxu0 0.0
          %1443 = vmatprep.subr.mxu0 0.0
          %1444 = vmatpush1.msra.mxu0 0.0
          %1445 = vmatprep.subr.mxu0 0.0
          %1446 = vmatpush1.msra.mxu0 0.0
          %1447 = vmatprep.subr.mxu0 0.0
          %1448 = vmatpush1.msra.mxu0 0.0
          %1449 = vmatprep.subr.mxu0 0.0
          %1450 = vmatpush1.msra.mxu0 0.0
          %1451 = vmatprep.subr.mxu0 0.0
          %1452 = vmatpush1.msra.mxu0 0.0
          %1453 = vmatprep.subr.mxu0 0.0
          %1454 = vmatpush1.msra.mxu0 0.0
          %1455 = vmatprep.subr.mxu0 0.0
          %1456 = vmatpush1.msra.mxu0 0.0
          %1457 = vmatprep.subr.mxu0 0.0
          %1458 = vmatpush1.msra.mxu0 0.0
          %1459 = vmatprep.subr.mxu0 0.0
          %1460 = vmatpush1.msra.mxu0 0.0
          %1461 = vmatprep.subr.mxu0 0.0
          %1462 = vmatpush1.msra.mxu0 0.0
          %1463 = vmatprep.subr.mxu0 0.0
          %1464 = vmatpush1.msra.mxu0 0.0
          %1465 = vmatprep.subr.mxu0 0.0
          %1466 = vmatpush1.msra.mxu0 0.0
          %1467 = vmatprep.subr.mxu0 0.0
          %1468 = vmatpush1.msra.mxu0 0.0
          %1469 = vmatprep.subr.mxu0 0.0
          %1470 = vmatpush1.msra.mxu0 0.0
          %1471 = vmatprep.subr.mxu0 0.0
          %1472 = vmatpush1.msra.mxu0 0.0
          %1473 = vmatprep.subr.mxu0 0.0
          %1474 = vmatpush1.msra.mxu0 0.0
          %1475 = vmatprep.subr.mxu0 0.0
          %1476 = vmatpush1.msra.mxu0 0.0
          %1477 = vmatprep.subr.mxu0 0.0
          %1478 = vmatpush1.msra.mxu0 0.0
          %1479 = vmatprep.subr.mxu0 0.0
          %1480 = vmatpush1.msra.mxu0 0.0
          %1481 = vmatprep.subr.mxu0 0.0
          %1482 = vmatpush1.msra.mxu0 0.0
          %1483 = vmatprep.subr.mxu0 0.0
          %1484 = vmatpush1.msra.mxu0 0.0
          %1485 = vmatprep.subr.mxu0 0.0
          %1486 = vmatpush1.msra.mxu0 0.0
          %1487 = vmatprep.subr.mxu0 0.0
          %1488 = vmatpush1.msra.mxu0 0.0
          %1489 = vmatprep.subr.mxu0 0.0
          %1490 = vmatpush1.msra.mxu0 0.0
          %1491 = vmatprep.subr.mxu0 0.0
          %1492 = vmatpush1.msra.mxu0 0.0
          %1493 = vmatprep.subr.mxu0 0.0
          %1494 = vmatpush1.msra.mxu0 0.0
          %1495 = vmatprep.subr.mxu0 0.0
          %1496 = vmatpush1.msra.mxu0 0.0
          %1497 = vmatprep.mubr.f32.mxu0 0.0
          %1498 = vmatmul.mubr.f32.gmra.mrb[0].mxu0 %v1428
          %v1499 = vpop.f32.mrb[0].mxu0
          %v1500 = vadd.f32 0.0, %v1499
          %v1501 = vpop.f32.mrb[0].mxu0
          %1502 = vmatprep.mubr.f32.mxu0 0.0
          %1503 = vmatmul.mubr.f32.gmra.mrb[0].mxu0 %v1431
          %v1504 = vpop.f32.mrb[0].mxu0
          %v1505 = vadd.f32 0.0, %v1504
          %v1506 = vpop.f32.mrb[0].mxu0
          %1507 = vdwg.mxu0
          %v1509 = vsel %vm560, %v940, 0
          %v1512 = vsel %vm560, %v941, 0
          %1514 = vmatprep.subr.mxu0 0.0
          %1515 = vmatpush1.msra.mxu0 %v942
          %1516 = vmatprep.subr.mxu0 0.0
          %1517 = vmatpush1.msra.mxu0 0.0
          %1518 = vmatprep.subr.mxu0 0.0
          %1519 = vmatpush1.msra.mxu0 0.0
          %1520 = vmatprep.subr.mxu0 0.0
          %1521 = vmatpush1.msra.mxu0 0.0
          %1522 = vmatprep.subr.mxu0 0.0
          %1523 = vmatpush1.msra.mxu0 0.0
          %1524 = vmatprep.subr.mxu0 0.0
          %1525 = vmatpush1.msra.mxu0 0.0
          %1526 = vmatprep.subr.mxu0 0.0
          %1527 = vmatpush1.msra.mxu0 0.0
          %1528 = vmatprep.subr.mxu0 0.0
          %1529 = vmatpush1.msra.mxu0 0.0
          %1530 = vmatprep.subr.mxu0 0.0
          %1531 = vmatpush1.msra.mxu0 0.0
          %1532 = vmatprep.subr.mxu0 0.0
          %1533 = vmatpush1.msra.mxu0 0.0
          %1534 = vmatprep.subr.mxu0 0.0
          %1535 = vmatpush1.msra.mxu0 0.0
          %1536 = vmatprep.subr.mxu0 0.0
          %1537 = vmatpush1.msra.mxu0 0.0
          %1538 = vmatprep.subr.mxu0 0.0
          %1539 = vmatpush1.msra.mxu0 0.0
          %1540 = vmatprep.subr.mxu0 0.0
          %1541 = vmatpush1.msra.mxu0 0.0
          %1542 = vmatprep.subr.mxu0 0.0
          %1543 = vmatpush1.msra.mxu0 0.0
          %1544 = vmatprep.subr.mxu0 0.0
          %1545 = vmatpush1.msra.mxu0 0.0
          %1546 = vmatprep.subr.mxu0 0.0
          %1547 = vmatpush1.msra.mxu0 0.0
          %1548 = vmatprep.subr.mxu0 0.0
          %1549 = vmatpush1.msra.mxu0 0.0
          %1550 = vmatprep.subr.mxu0 0.0
          %1551 = vmatpush1.msra.mxu0 0.0
          %1552 = vmatprep.subr.mxu0 0.0
          %1553 = vmatpush1.msra.mxu0 0.0
          %1554 = vmatprep.subr.mxu0 0.0
          %1555 = vmatpush1.msra.mxu0 0.0
          %1556 = vmatprep.subr.mxu0 0.0
          %1557 = vmatpush1.msra.mxu0 0.0
          %1558 = vmatprep.subr.mxu0 0.0
          %1559 = vmatpush1.msra.mxu0 0.0
          %1560 = vmatprep.subr.mxu0 0.0
          %1561 = vmatpush1.msra.mxu0 0.0
          %1562 = vmatprep.subr.mxu0 0.0
          %1563 = vmatpush1.msra.mxu0 0.0
          %1564 = vmatprep.subr.mxu0 0.0
          %1565 = vmatpush1.msra.mxu0 0.0
          %1566 = vmatprep.subr.mxu0 0.0
          %1567 = vmatpush1.msra.mxu0 0.0
          %1568 = vmatprep.subr.mxu0 0.0
          %1569 = vmatpush1.msra.mxu0 0.0
          %1570 = vmatprep.subr.mxu0 0.0
          %1571 = vmatpush1.msra.mxu0 0.0
          %1572 = vmatprep.subr.mxu0 0.0
          %1573 = vmatpush1.msra.mxu0 0.0
          %1574 = vmatprep.subr.mxu0 0.0
          %1575 = vmatpush1.msra.mxu0 0.0
          %1576 = vmatprep.subr.mxu0 0.0
          %1577 = vmatpush1.msra.mxu0 0.0
          %1578 = vmatprep.mubr.f32.mxu0 0.0
          %1579 = vmatmul.mubr.f32.gmra.mrb[0].mxu0 %v1509
          %v1580 = vpop.f32.mrb[0].mxu0
          %v1581 = vadd.f32 %v1500, %v1580
          %v1582 = vpop.f32.mrb[0].mxu0
          %1583 = vmatprep.mubr.f32.mxu0 0.0
          %1584 = vmatmul.mubr.f32.gmra.mrb[0].mxu0 %v1512
          %v1585 = vpop.f32.mrb[0].mxu0
          %v1586 = vadd.f32 %v1505, %v1585
          %v1587 = vpop.f32.mrb[0].mxu0
          %1588 = vdwg.mxu0
          %v1589 = vld [vmem:[%s2 + $0x2] sm:$0x1]
          %v1590 = vlaneseq
          %v1591 = vshrl.u32 %v1590, 7
          %v1592 = vsub.s32 0, %v1591
          %v1593 = vrot.slane %v1589, %v1592
          %v1594 = vmul.f32 %v415, %v1593
          %v1595 = vmul.f32 %v416, %v1593
          %v1596 = vmul.f32 %v417, %v1593
          %v1597 = vmul.f32 %v418, %v1593
          %v1598 = vmul.f32 %v419, %v1593
          %v1599 = vmul.f32 %v420, %v1593
          %v1600 = vmul.f32 %v421, %v1593
          %v1601 = vmul.f32 %v422, %v1593
          %v1602 = vsel %vm436, %v1594, 0.0
          %1603 = vadd.xlane.f32.xlu0 %v1602
          %v1604 = vpop.xlane.xlu0 %1603
          %v1605 = vsel %vm436, %v1595, 0.0
          %1606 = vadd.xlane.f32.xlu0 %v1605
          %v1607 = vpop.xlane.xlu0 %1606
          %v1608 = vsel %vm436, %v1596, 0.0
          %1609 = vadd.xlane.f32.xlu0 %v1608
          %v1610 = vpop.xlane.xlu0 %1609
          %v1611 = vsel %vm436, %v1597, 0.0
          %1612 = vadd.xlane.f32.xlu0 %v1611
          %v1613 = vpop.xlane.xlu0 %1612
          %v1614 = vsel %vm436, %v1598, 0.0
          %1615 = vadd.xlane.f32.xlu0 %v1614
          %v1616 = vpop.xlane.xlu0 %1615
          %v1617 = vsel %vm436, %v1599, 0.0
          %1618 = vadd.xlane.f32.xlu0 %v1617
          %v1619 = vpop.xlane.xlu0 %1618
          %v1620 = vsel %vm436, %v1600, 0.0
          %1621 = vadd.xlane.f32.xlu0 %v1620
          %v1622 = vpop.xlane.xlu0 %1621
          %v1623 = vsel %vm436, %v1601, 0.0
          %1624 = vadd.xlane.f32.xlu0 %v1623
          %v1625 = vpop.xlane.xlu0 %1624
          %v1626 = vld [vmem:[%s2 + $0x5] sm:$0x1]
          %v1627 = vlaneseq
          %v1628 = vshrl.u32 %v1627, 7
          %v1629 = vsub.s32 0, %v1628
          %v1630 = vrot.slane %v1626, %v1629
          %v1631 = vmul.f32 %v415, %v1630
          %v1632 = vmul.f32 %v416, %v1630
          %v1633 = vmul.f32 %v417, %v1630
          %v1634 = vmul.f32 %v418, %v1630
          %v1635 = vmul.f32 %v419, %v1630
          %v1636 = vmul.f32 %v420, %v1630
          %v1637 = vmul.f32 %v421, %v1630
          %v1638 = vmul.f32 %v422, %v1630
          %v1639 = vsel %vm436, %v1631, 0.0
          %1640 = vadd.xlane.f32.xlu0 %v1639
          %v1641 = vpop.xlane.xlu0 %1640
          %v1642 = vsel %vm436, %v1632, 0.0
          %1643 = vadd.xlane.f32.xlu0 %v1642
          %v1644 = vpop.xlane.xlu0 %1643
          %v1645 = vsel %vm436, %v1633, 0.0
          %1646 = vadd.xlane.f32.xlu0 %v1645
          %v1647 = vpop.xlane.xlu0 %1646
          %v1648 = vsel %vm436, %v1634, 0.0
          %1649 = vadd.xlane.f32.xlu0 %v1648
          %v1650 = vpop.xlane.xlu0 %1649
          %v1651 = vsel %vm436, %v1635, 0.0
          %1652 = vadd.xlane.f32.xlu0 %v1651
          %v1653 = vpop.xlane.xlu0 %1652
          %v1654 = vsel %vm436, %v1636, 0.0
          %1655 = vadd.xlane.f32.xlu0 %v1654
          %v1656 = vpop.xlane.xlu0 %1655
          %v1657 = vsel %vm436, %v1637, 0.0
          %1658 = vadd.xlane.f32.xlu0 %v1657
          %v1659 = vpop.xlane.xlu0 %1658
          %v1660 = vsel %vm436, %v1638, 0.0
          %1661 = vadd.xlane.f32.xlu0 %v1660
          %v1662 = vpop.xlane.xlu0 %1661
          %v1671 = vlaneseq
          %v1672 = vshrl.u32 %v1671, 7
          %v1673 = vsub.s32 %v512, %v1672
          %v1674 = vrot.slane %v1641, %v1673
          %v1675 = vlaneseq
          %v1676 = vshrl.u32 %v1675, 7
          %v1677 = vsub.s32 %v512, %v1676
          %v1678 = vrot.slane %v1644, %v1677
          %v1679 = vlaneseq
          %v1680 = vshrl.u32 %v1679, 7
          %v1681 = vsub.s32 %v512, %v1680
          %v1682 = vrot.slane %v1647, %v1681
          %v1683 = vlaneseq
          %v1684 = vshrl.u32 %v1683, 7
          %v1685 = vsub.s32 %v512, %v1684
          %v1686 = vrot.slane %v1650, %v1685
          %v1687 = vlaneseq
          %v1688 = vshrl.u32 %v1687, 7
          %v1689 = vsub.s32 %v512, %v1688
          %v1690 = vrot.slane %v1653, %v1689
          %v1691 = vlaneseq
          %v1692 = vshrl.u32 %v1691, 7
          %v1693 = vsub.s32 %v512, %v1692
          %v1694 = vrot.slane %v1656, %v1693
          %v1695 = vlaneseq
          %v1696 = vshrl.u32 %v1695, 7
          %v1697 = vsub.s32 %v512, %v1696
          %v1698 = vrot.slane %v1659, %v1697
          %v1699 = vlaneseq
          %v1700 = vshrl.u32 %v1699, 7
          %v1701 = vsub.s32 %v512, %v1700
          %v1702 = vrot.slane %v1662, %v1701
          %v1703 = vsel %vm545, %v1678, %v1674
          %v1704 = vsel %vm547, %v1682, %v1703
          %v1705 = vsel %vm549, %v1686, %v1704
          %v1706 = vsel %vm551, %v1690, %v1705
          %v1707 = vsel %vm553, %v1694, %v1706
          %v1708 = vsel %vm555, %v1698, %v1707
          %v1709 = vsel %vm557, %v1702, %v1708
          %1711 = vmatprep.subr.mxu0 0.0
          %1712 = vmatpush1.msra.mxu0 %v1709
          %1713 = vmatprep.subr.mxu0 0.0
          %1714 = vmatpush1.msra.mxu0 0.0
          %1715 = vmatprep.subr.mxu0 0.0
          %1716 = vmatpush1.msra.mxu0 0.0
          %1717 = vmatprep.subr.mxu0 0.0
          %1718 = vmatpush1.msra.mxu0 0.0
          %1719 = vmatprep.subr.mxu0 0.0
          %1720 = vmatpush1.msra.mxu0 0.0
          %1721 = vmatprep.subr.mxu0 0.0
          %1722 = vmatpush1.msra.mxu0 0.0
          %1723 = vmatprep.subr.mxu0 0.0
          %1724 = vmatpush1.msra.mxu0 0.0
          %1725 = vmatprep.subr.mxu0 0.0
          %1726 = vmatpush1.msra.mxu0 0.0
          %1727 = vmatprep.subr.mxu0 0.0
          %1728 = vmatpush1.msra.mxu0 0.0
          %1729 = vmatprep.subr.mxu0 0.0
          %1730 = vmatpush1.msra.mxu0 0.0
          %1731 = vmatprep.subr.mxu0 0.0
          %1732 = vmatpush1.msra.mxu0 0.0
          %1733 = vmatprep.subr.mxu0 0.0
          %1734 = vmatpush1.msra.mxu0 0.0
          %1735 = vmatprep.subr.mxu0 0.0
          %1736 = vmatpush1.msra.mxu0 0.0
          %1737 = vmatprep.subr.mxu0 0.0
          %1738 = vmatpush1.msra.mxu0 0.0
          %1739 = vmatprep.subr.mxu0 0.0
          %1740 = vmatpush1.msra.mxu0 0.0
          %1741 = vmatprep.subr.mxu0 0.0
          %1742 = vmatpush1.msra.mxu0 0.0
          %1743 = vmatprep.subr.mxu0 0.0
          %1744 = vmatpush1.msra.mxu0 0.0
          %1745 = vmatprep.subr.mxu0 0.0
          %1746 = vmatpush1.msra.mxu0 0.0
          %1747 = vmatprep.subr.mxu0 0.0
          %1748 = vmatpush1.msra.mxu0 0.0
          %1749 = vmatprep.subr.mxu0 0.0
          %1750 = vmatpush1.msra.mxu0 0.0
          %1751 = vmatprep.subr.mxu0 0.0
          %1752 = vmatpush1.msra.mxu0 0.0
          %1753 = vmatprep.subr.mxu0 0.0
          %1754 = vmatpush1.msra.mxu0 0.0
          %1755 = vmatprep.subr.mxu0 0.0
          %1756 = vmatpush1.msra.mxu0 0.0
          %1757 = vmatprep.subr.mxu0 0.0
          %1758 = vmatpush1.msra.mxu0 0.0
          %1759 = vmatprep.subr.mxu0 0.0
          %1760 = vmatpush1.msra.mxu0 0.0
          %1761 = vmatprep.subr.mxu0 0.0
          %1762 = vmatpush1.msra.mxu0 0.0
          %1763 = vmatprep.subr.mxu0 0.0
          %1764 = vmatpush1.msra.mxu0 0.0
          %1765 = vmatprep.subr.mxu0 0.0
          %1766 = vmatpush1.msra.mxu0 0.0
          %1767 = vmatprep.subr.mxu0 0.0
          %1768 = vmatpush1.msra.mxu0 0.0
          %1769 = vmatprep.subr.mxu0 0.0
          %1770 = vmatpush1.msra.mxu0 0.0
          %1771 = vmatprep.subr.mxu0 0.0
          %1772 = vmatpush1.msra.mxu0 0.0
          %1773 = vmatprep.subr.mxu0 0.0
          %1774 = vmatpush1.msra.mxu0 0.0
          %1775 = vmatprep.mubr.f32.mxu0 0.0
          %1776 = vmatmul.mubr.f32.gmra.mrb[0].mxu0 %v562
          %v1777 = vpop.f32.mrb[0].mxu0
          %v1778 = vadd.f32 0.0, %v1777
          %v1779 = vpop.f32.mrb[0].mxu0
          %1780 = vmatprep.mubr.f32.mxu0 0.0
          %1781 = vmatmul.mubr.f32.gmra.mrb[0].mxu0 %v565
          %v1782 = vpop.f32.mrb[0].mxu0
          %v1783 = vadd.f32 0.0, %v1782
          %v1784 = vpop.f32.mrb[0].mxu0
          %1785 = vdwg.mxu0
          %v1794 = vlaneseq
          %v1795 = vshrl.u32 %v1794, 7
          %v1796 = vsub.s32 %v512, %v1795
          %v1797 = vrot.slane %v1604, %v1796
          %v1798 = vlaneseq
          %v1799 = vshrl.u32 %v1798, 7
          %v1800 = vsub.s32 %v512, %v1799
          %v1801 = vrot.slane %v1607, %v1800
          %v1802 = vlaneseq
          %v1803 = vshrl.u32 %v1802, 7
          %v1804 = vsub.s32 %v512, %v1803
          %v1805 = vrot.slane %v1610, %v1804
          %v1806 = vlaneseq
          %v1807 = vshrl.u32 %v1806, 7
          %v1808 = vsub.s32 %v512, %v1807
          %v1809 = vrot.slane %v1613, %v1808
          %v1810 = vlaneseq
          %v1811 = vshrl.u32 %v1810, 7
          %v1812 = vsub.s32 %v512, %v1811
          %v1813 = vrot.slane %v1616, %v1812
          %v1814 = vlaneseq
          %v1815 = vshrl.u32 %v1814, 7
          %v1816 = vsub.s32 %v512, %v1815
          %v1817 = vrot.slane %v1619, %v1816
          %v1818 = vlaneseq
          %v1819 = vshrl.u32 %v1818, 7
          %v1820 = vsub.s32 %v512, %v1819
          %v1821 = vrot.slane %v1622, %v1820
          %v1822 = vlaneseq
          %v1823 = vshrl.u32 %v1822, 7
          %v1824 = vsub.s32 %v512, %v1823
          %v1825 = vrot.slane %v1625, %v1824
          %v1826 = vsel %vm545, %v1801, %v1797
          %v1827 = vsel %vm547, %v1805, %v1826
          %v1828 = vsel %vm549, %v1809, %v1827
          %v1829 = vsel %vm551, %v1813, %v1828
          %v1830 = vsel %vm553, %v1817, %v1829
          %v1831 = vsel %vm555, %v1821, %v1830
          %v1832 = vsel %vm557, %v1825, %v1831
          %1834 = vmatprep.subr.mxu0 0.0
          %1835 = vmatpush1.msra.mxu0 %v1832
          %1836 = vmatprep.subr.mxu0 0.0
          %1837 = vmatpush1.msra.mxu0 0.0
          %1838 = vmatprep.subr.mxu0 0.0
          %1839 = vmatpush1.msra.mxu0 0.0
          %1840 = vmatprep.subr.mxu0 0.0
          %1841 = vmatpush1.msra.mxu0 0.0
          %1842 = vmatprep.subr.mxu0 0.0
          %1843 = vmatpush1.msra.mxu0 0.0
          %1844 = vmatprep.subr.mxu0 0.0
          %1845 = vmatpush1.msra.mxu0 0.0
          %1846 = vmatprep.subr.mxu0 0.0
          %1847 = vmatpush1.msra.mxu0 0.0
          %1848 = vmatprep.subr.mxu0 0.0
          %1849 = vmatpush1.msra.mxu0 0.0
          %1850 = vmatprep.subr.mxu0 0.0
          %1851 = vmatpush1.msra.mxu0 0.0
          %1852 = vmatprep.subr.mxu0 0.0
          %1853 = vmatpush1.msra.mxu0 0.0
          %1854 = vmatprep.subr.mxu0 0.0
          %1855 = vmatpush1.msra.mxu0 0.0
          %1856 = vmatprep.subr.mxu0 0.0
          %1857 = vmatpush1.msra.mxu0 0.0
          %1858 = vmatprep.subr.mxu0 0.0
          %1859 = vmatpush1.msra.mxu0 0.0
          %1860 = vmatprep.subr.mxu0 0.0
          %1861 = vmatpush1.msra.mxu0 0.0
          %1862 = vmatprep.subr.mxu0 0.0
          %1863 = vmatpush1.msra.mxu0 0.0
          %1864 = vmatprep.subr.mxu0 0.0
          %1865 = vmatpush1.msra.mxu0 0.0
          %1866 = vmatprep.subr.mxu0 0.0
          %1867 = vmatpush1.msra.mxu0 0.0
          %1868 = vmatprep.subr.mxu0 0.0
          %1869 = vmatpush1.msra.mxu0 0.0
          %1870 = vmatprep.subr.mxu0 0.0
          %1871 = vmatpush1.msra.mxu0 0.0
          %1872 = vmatprep.subr.mxu0 0.0
          %1873 = vmatpush1.msra.mxu0 0.0
          %1874 = vmatprep.subr.mxu0 0.0
          %1875 = vmatpush1.msra.mxu0 0.0
          %1876 = vmatprep.subr.mxu0 0.0
          %1877 = vmatpush1.msra.mxu0 0.0
          %1878 = vmatprep.subr.mxu0 0.0
          %1879 = vmatpush1.msra.mxu0 0.0
          %1880 = vmatprep.subr.mxu0 0.0
          %1881 = vmatpush1.msra.mxu0 0.0
          %1882 = vmatprep.subr.mxu0 0.0
          %1883 = vmatpush1.msra.mxu0 0.0
          %1884 = vmatprep.subr.mxu0 0.0
          %1885 = vmatpush1.msra.mxu0 0.0
          %1886 = vmatprep.subr.mxu0 0.0
          %1887 = vmatpush1.msra.mxu0 0.0
          %1888 = vmatprep.subr.mxu0 0.0
          %1889 = vmatpush1.msra.mxu0 0.0
          %1890 = vmatprep.subr.mxu0 0.0
          %1891 = vmatpush1.msra.mxu0 0.0
          %1892 = vmatprep.subr.mxu0 0.0
          %1893 = vmatpush1.msra.mxu0 0.0
          %1894 = vmatprep.subr.mxu0 0.0
          %1895 = vmatpush1.msra.mxu0 0.0
          %1896 = vmatprep.subr.mxu0 0.0
          %1897 = vmatpush1.msra.mxu0 0.0
          %1898 = vmatprep.mubr.f32.mxu0 0.0
          %1899 = vmatmul.mubr.f32.gmra.mrb[0].mxu0 %v691
          %v1900 = vpop.f32.mrb[0].mxu0
          %v1901 = vadd.f32 %v1778, %v1900
          %v1902 = vpop.f32.mrb[0].mxu0
          %1903 = vmatprep.mubr.f32.mxu0 0.0
          %1904 = vmatmul.mubr.f32.gmra.mrb[0].mxu0 %v694
          %v1905 = vpop.f32.mrb[0].mxu0
          %v1906 = vadd.f32 %v1783, %v1905
          %v1907 = vpop.f32.mrb[0].mxu0
          %1908 = vdwg.mxu0
          %v1909 = vld [vmem:[%s2 + $0x8] sm:$0x1]
          %v1910 = vlaneseq
          %v1911 = vshrl.u32 %v1910, 7
          %v1912 = vsub.s32 0, %v1911
          %v1913 = vrot.slane %v1909, %v1912
          %v1914 = vmul.f32 %v415, %v1913
          %v1915 = vmul.f32 %v416, %v1913
          %v1916 = vmul.f32 %v417, %v1913
          %v1917 = vmul.f32 %v418, %v1913
          %v1918 = vmul.f32 %v419, %v1913
          %v1919 = vmul.f32 %v420, %v1913
          %v1920 = vmul.f32 %v421, %v1913
          %v1921 = vmul.f32 %v422, %v1913
          %v1922 = vsel %vm436, %v1914, 0.0
          %1923 = vadd.xlane.f32.xlu0 %v1922
          %v1924 = vpop.xlane.xlu0 %1923
          %v1925 = vsel %vm436, %v1915, 0.0
          %1926 = vadd.xlane.f32.xlu0 %v1925
          %v1927 = vpop.xlane.xlu0 %1926
          %v1928 = vsel %vm436, %v1916, 0.0
          %1929 = vadd.xlane.f32.xlu0 %v1928
          %v1930 = vpop.xlane.xlu0 %1929
          %v1931 = vsel %vm436, %v1917, 0.0
          %1932 = vadd.xlane.f32.xlu0 %v1931
          %v1933 = vpop.xlane.xlu0 %1932
          %v1934 = vsel %vm436, %v1918, 0.0
          %1935 = vadd.xlane.f32.xlu0 %v1934
          %v1936 = vpop.xlane.xlu0 %1935
          %v1937 = vsel %vm436, %v1919, 0.0
          %1938 = vadd.xlane.f32.xlu0 %v1937
          %v1939 = vpop.xlane.xlu0 %1938
          %v1940 = vsel %vm436, %v1920, 0.0
          %1941 = vadd.xlane.f32.xlu0 %v1940
          %v1942 = vpop.xlane.xlu0 %1941
          %v1943 = vsel %vm436, %v1921, 0.0
          %1944 = vadd.xlane.f32.xlu0 %v1943
          %v1945 = vpop.xlane.xlu0 %1944
          %v1954 = vlaneseq
          %v1955 = vshrl.u32 %v1954, 7
          %v1956 = vsub.s32 %v512, %v1955
          %v1957 = vrot.slane %v1924, %v1956
          %v1958 = vlaneseq
          %v1959 = vshrl.u32 %v1958, 7
          %v1960 = vsub.s32 %v512, %v1959
          %v1961 = vrot.slane %v1927, %v1960
          %v1962 = vlaneseq
          %v1963 = vshrl.u32 %v1962, 7
          %v1964 = vsub.s32 %v512, %v1963
          %v1965 = vrot.slane %v1930, %v1964
          %v1966 = vlaneseq
          %v1967 = vshrl.u32 %v1966, 7
          %v1968 = vsub.s32 %v512, %v1967
          %v1969 = vrot.slane %v1933, %v1968
          %v1970 = vlaneseq
          %v1971 = vshrl.u32 %v1970, 7
          %v1972 = vsub.s32 %v512, %v1971
          %v1973 = vrot.slane %v1936, %v1972
          %v1974 = vlaneseq
          %v1975 = vshrl.u32 %v1974, 7
          %v1976 = vsub.s32 %v512, %v1975
          %v1977 = vrot.slane %v1939, %v1976
          %v1978 = vlaneseq
          %v1979 = vshrl.u32 %v1978, 7
          %v1980 = vsub.s32 %v512, %v1979
          %v1981 = vrot.slane %v1942, %v1980
          %v1982 = vlaneseq
          %v1983 = vshrl.u32 %v1982, 7
          %v1984 = vsub.s32 %v512, %v1983
          %v1985 = vrot.slane %v1945, %v1984
          %v1986 = vsel %vm545, %v1961, %v1957
          %v1987 = vsel %vm547, %v1965, %v1986
          %v1988 = vsel %vm549, %v1969, %v1987
          %v1989 = vsel %vm551, %v1973, %v1988
          %v1990 = vsel %vm553, %v1977, %v1989
          %v1991 = vsel %vm555, %v1981, %v1990
          %v1992 = vsel %vm557, %v1985, %v1991
          %1994 = vmatprep.subr.mxu0 0.0
          %1995 = vmatpush1.msra.mxu0 %v1992
          %1996 = vmatprep.subr.mxu0 0.0
          %1997 = vmatpush1.msra.mxu0 0.0
          %1998 = vmatprep.subr.mxu0 0.0
          %1999 = vmatpush1.msra.mxu0 0.0
          %2000 = vmatprep.subr.mxu0 0.0
          %2001 = vmatpush1.msra.mxu0 0.0
          %2002 = vmatprep.subr.mxu0 0.0
          %2003 = vmatpush1.msra.mxu0 0.0
          %2004 = vmatprep.subr.mxu0 0.0
          %2005 = vmatpush1.msra.mxu0 0.0
          %2006 = vmatprep.subr.mxu0 0.0
          %2007 = vmatpush1.msra.mxu0 0.0
          %2008 = vmatprep.subr.mxu0 0.0
          %2009 = vmatpush1.msra.mxu0 0.0
          %2010 = vmatprep.subr.mxu0 0.0
          %2011 = vmatpush1.msra.mxu0 0.0
          %2012 = vmatprep.subr.mxu0 0.0
          %2013 = vmatpush1.msra.mxu0 0.0
          %2014 = vmatprep.subr.mxu0 0.0
          %2015 = vmatpush1.msra.mxu0 0.0
          %2016 = vmatprep.subr.mxu0 0.0
          %2017 = vmatpush1.msra.mxu0 0.0
          %2018 = vmatprep.subr.mxu0 0.0
          %2019 = vmatpush1.msra.mxu0 0.0
          %2020 = vmatprep.subr.mxu0 0.0
          %2021 = vmatpush1.msra.mxu0 0.0
          %2022 = vmatprep.subr.mxu0 0.0
          %2023 = vmatpush1.msra.mxu0 0.0
          %2024 = vmatprep.subr.mxu0 0.0
          %2025 = vmatpush1.msra.mxu0 0.0
          %2026 = vmatprep.subr.mxu0 0.0
          %2027 = vmatpush1.msra.mxu0 0.0
          %2028 = vmatprep.subr.mxu0 0.0
          %2029 = vmatpush1.msra.mxu0 0.0
          %2030 = vmatprep.subr.mxu0 0.0
          %2031 = vmatpush1.msra.mxu0 0.0
          %2032 = vmatprep.subr.mxu0 0.0
          %2033 = vmatpush1.msra.mxu0 0.0
          %2034 = vmatprep.subr.mxu0 0.0
          %2035 = vmatpush1.msra.mxu0 0.0
          %2036 = vmatprep.subr.mxu0 0.0
          %2037 = vmatpush1.msra.mxu0 0.0
          %2038 = vmatprep.subr.mxu0 0.0
          %2039 = vmatpush1.msra.mxu0 0.0
          %2040 = vmatprep.subr.mxu0 0.0
          %2041 = vmatpush1.msra.mxu0 0.0
          %2042 = vmatprep.subr.mxu0 0.0
          %2043 = vmatpush1.msra.mxu0 0.0
          %2044 = vmatprep.subr.mxu0 0.0
          %2045 = vmatpush1.msra.mxu0 0.0
          %2046 = vmatprep.subr.mxu0 0.0
          %2047 = vmatpush1.msra.mxu0 0.0
          %2048 = vmatprep.subr.mxu0 0.0
          %2049 = vmatpush1.msra.mxu0 0.0
          %2050 = vmatprep.subr.mxu0 0.0
          %2051 = vmatpush1.msra.mxu0 0.0
          %2052 = vmatprep.subr.mxu0 0.0
          %2053 = vmatpush1.msra.mxu0 0.0
          %2054 = vmatprep.subr.mxu0 0.0
          %2055 = vmatpush1.msra.mxu0 0.0
          %2056 = vmatprep.subr.mxu0 0.0
          %2057 = vmatpush1.msra.mxu0 0.0
          %2058 = vmatprep.mubr.f32.mxu0 0.0
          %2059 = vmatmul.mubr.f32.gmra.mrb[0].mxu0 %v860
          %v2060 = vpop.f32.mrb[0].mxu0
          %v2061 = vadd.f32 0.0, %v2060
          %v2062 = vpop.f32.mrb[0].mxu0
          %2063 = vmatprep.mubr.f32.mxu0 0.0
          %2064 = vmatmul.mubr.f32.gmra.mrb[0].mxu0 %v863
          %v2065 = vpop.f32.mrb[0].mxu0
          %v2066 = vadd.f32 0.0, %v2065
          %v2067 = vpop.f32.mrb[0].mxu0
          %2068 = vdwg.mxu0
          %v2069 = vadd.f32 %v1901, %v2061
          %v2070 = vadd.f32 %v1906, %v2066
          %s2071 = scalar_lea.vmem %s5, 16
          %v2072 = vld [vmem:[%s2071] sm:$0xff]
          %v2074 = vsel %vm560, %v2069, 0
          %v2077 = vsel %vm560, %v2070, 0
          %2079 = vmatprep.subr.mxu0 0.0
          %2080 = vmatpush1.msra.mxu0 %v2072
          %2081 = vmatprep.subr.mxu0 0.0
          %2082 = vmatpush1.msra.mxu0 0.0
          %2083 = vmatprep.subr.mxu0 0.0
          %2084 = vmatpush1.msra.mxu0 0.0
          %2085 = vmatprep.subr.mxu0 0.0
          %2086 = vmatpush1.msra.mxu0 0.0
          %2087 = vmatprep.subr.mxu0 0.0
          %2088 = vmatpush1.msra.mxu0 0.0
          %2089 = vmatprep.subr.mxu0 0.0
          %2090 = vmatpush1.msra.mxu0 0.0
          %2091 = vmatprep.subr.mxu0 0.0
          %2092 = vmatpush1.msra.mxu0 0.0
          %2093 = vmatprep.subr.mxu0 0.0
          %2094 = vmatpush1.msra.mxu0 0.0
          %2095 = vmatprep.subr.mxu0 0.0
          %2096 = vmatpush1.msra.mxu0 0.0
          %2097 = vmatprep.subr.mxu0 0.0
          %2098 = vmatpush1.msra.mxu0 0.0
          %2099 = vmatprep.subr.mxu0 0.0
          %2100 = vmatpush1.msra.mxu0 0.0
          %2101 = vmatprep.subr.mxu0 0.0
          %2102 = vmatpush1.msra.mxu0 0.0
          %2103 = vmatprep.subr.mxu0 0.0
          %2104 = vmatpush1.msra.mxu0 0.0
          %2105 = vmatprep.subr.mxu0 0.0
          %2106 = vmatpush1.msra.mxu0 0.0
          %2107 = vmatprep.subr.mxu0 0.0
          %2108 = vmatpush1.msra.mxu0 0.0
          %2109 = vmatprep.subr.mxu0 0.0
          %2110 = vmatpush1.msra.mxu0 0.0
          %2111 = vmatprep.subr.mxu0 0.0
          %2112 = vmatpush1.msra.mxu0 0.0
          %2113 = vmatprep.subr.mxu0 0.0
          %2114 = vmatpush1.msra.mxu0 0.0
          %2115 = vmatprep.subr.mxu0 0.0
          %2116 = vmatpush1.msra.mxu0 0.0
          %2117 = vmatprep.subr.mxu0 0.0
          %2118 = vmatpush1.msra.mxu0 0.0
          %2119 = vmatprep.subr.mxu0 0.0
          %2120 = vmatpush1.msra.mxu0 0.0
          %2121 = vmatprep.subr.mxu0 0.0
          %2122 = vmatpush1.msra.mxu0 0.0
          %2123 = vmatprep.subr.mxu0 0.0
          %2124 = vmatpush1.msra.mxu0 0.0
          %2125 = vmatprep.subr.mxu0 0.0
          %2126 = vmatpush1.msra.mxu0 0.0
          %2127 = vmatprep.subr.mxu0 0.0
          %2128 = vmatpush1.msra.mxu0 0.0
          %2129 = vmatprep.subr.mxu0 0.0
          %2130 = vmatpush1.msra.mxu0 0.0
          %2131 = vmatprep.subr.mxu0 0.0
          %2132 = vmatpush1.msra.mxu0 0.0
          %2133 = vmatprep.subr.mxu0 0.0
          %2134 = vmatpush1.msra.mxu0 0.0
          %2135 = vmatprep.subr.mxu0 0.0
          %2136 = vmatpush1.msra.mxu0 0.0
          %2137 = vmatprep.subr.mxu0 0.0
          %2138 = vmatpush1.msra.mxu0 0.0
          %2139 = vmatprep.subr.mxu0 0.0
          %2140 = vmatpush1.msra.mxu0 0.0
          %2141 = vmatprep.subr.mxu0 0.0
          %2142 = vmatpush1.msra.mxu0 0.0
          %2143 = vmatprep.mubr.f32.mxu0 0.0
          %2144 = vmatmul.mubr.f32.gmra.mrb[0].mxu0 %v2074
          %v2145 = vpop.f32.mrb[0].mxu0
          %v2146 = vadd.f32 0.0, %v2145
          %v2147 = vpop.f32.mrb[0].mxu0
          %2148 = vmatprep.mubr.f32.mxu0 0.0
          %2149 = vmatmul.mubr.f32.gmra.mrb[0].mxu0 %v2077
          %v2150 = vpop.f32.mrb[0].mxu0
          %v2151 = vadd.f32 0.0, %v2150
          %v2152 = vpop.f32.mrb[0].mxu0
          %2153 = vdwg.mxu0
          %v2154 = vadd.f32 %v1581, %v2146
          %v2155 = vadd.f32 %v1586, %v2151
          %v2156 = vld [vmem:[#allocation3] sm:$0x1]
          %s2157 = vtos %v2156
          %v2158 = vstv %s2157
          %v2159 = vadd.f32 %v2154, %v2158
          %v2160 = vadd.f32 %v2155, %v2158
          %v2161 = vsub.f32 0.0, %v2159
          %v2162 = vsub.f32 0.0, %v2160
          %v2163 = vmul.f32 %v2161, 1.442695
          %v2164 = vpow.pop %v2163
          %v2165 = vmul.f32 %v2162, 1.442695
          %v2166 = vpow.pop %v2165
          %v2167 = vadd.f32 %v2164, 1.0
          %v2168 = vadd.f32 %v2166, 1.0
          %v2169 = vrcp.pop %v2167
          %v2170 = vmul.f32 1.0, %v2169
          %v2171 = vrcp.pop %v2168
          %v2172 = vmul.f32 1.0, %v2171
          %v2173 = vlaneseq
          %vm2174 = vcmp.ge.s32.totalorder %v2173, 0
          %vm2175 = vcmp.lt.s32.totalorder %v2173, 16
          %vm2176 = vmand %vm2174, %vm2175
          %2177 = vst.msk [vmem:[#allocation2] sm:$0x1] %vm2176, %v2170
          %v2180 = vunpack.c.l.s4 1966171168
          %v2181 = vunpack.c.0.s8 %v2180
          %v2182 = vlaneseq
          %v2183 = vshrl.u32 %v2182, 7
          %v2184 = vsub.s32 %v2181, %v2183
          %v2185 = vrot.slane %v2170, %v2184
          %v2186 = vcombine.high %v2185, %v2185
          %v2188 = vunpack.c.l.s4 1966171168
          %v2189 = vunpack.c.0.s8 %v2188
          %v2190 = vlaneseq
          %v2191 = vshrl.u32 %v2190, 7
          %v2192 = vsub.s32 %v2189, %v2191
          %v2193 = vrot.slane %v2185, %v2192
          %v2195 = vunpack.c.l.s4 1966171168
          %v2196 = vunpack.c.0.s8 %v2195
          %v2197 = vlaneseq
          %v2198 = vshrl.u32 %v2197, 7
          %v2199 = vsub.s32 %v2196, %v2198
          %v2200 = vrot.slane %v2186, %v2199
          %2201 = vrot.lane.b32.xlu0 %v2200, 16
          %v2202 = vpop.permute.xlu0 %2201
          %vm2204 = vcmp.ge.s32.totalorder %v2173, 16
          %vm2205 = vcmp.lt.s32.totalorder %v2173, 32
          %vm2206 = vmand %vm2204, %vm2205
          %2207 = vst.msk [vmem:[#allocation2] sm:$0x1] %vm2206, %v2202
          %v2208 = vcombine.high %v2193, %v2193
          %2209 = vrot.lane.b32.xlu0 %v2208, 32
          %v2210 = vpop.permute.xlu0 %2209
          %vm2212 = vcmp.ge.s32.totalorder %v2173, 32
          %vm2213 = vcmp.lt.s32.totalorder %v2173, 48
          %vm2214 = vmand %vm2212, %vm2213
          %2215 = vst.msk [vmem:[#allocation2] sm:$0x1] %vm2214, %v2210
          %v2216 = vcombine.high %v2200, %v2200
          %2217 = vrot.lane.b32.xlu0 %v2216, 48
          %v2218 = vpop.permute.xlu0 %2217
          %vm2220 = vcmp.ge.s32.totalorder %v2173, 48
          %vm2221 = vcmp.lt.s32.totalorder %v2173, 64
          %vm2222 = vmand %vm2220, %vm2221
          %2223 = vst.msk [vmem:[#allocation2] sm:$0x1] %vm2222, %v2218
          %v2224 = vcombine.high %v2170, %v2170
          %v2226 = vunpack.c.l.s4 1966171168
          %v2227 = vunpack.c.0.s8 %v2226
          %v2228 = vlaneseq
          %v2229 = vshrl.u32 %v2228, 7
          %v2230 = vsub.s32 %v2227, %v2229
          %v2231 = vrot.slane %v2224, %v2230
          %v2233 = vunpack.c.l.s4 1966171168
          %v2234 = vunpack.c.0.s8 %v2233
          %v2235 = vlaneseq
          %v2236 = vshrl.u32 %v2235, 7
          %v2237 = vsub.s32 %v2234, %v2236
          %v2238 = vrot.slane %v2231, %v2237
          %2239 = vrot.lane.b32.xlu0 %v2238, 64
          %v2240 = vpop.permute.xlu0 %2239
          %vm2242 = vcmp.ge.s32.totalorder %v2173, 64
          %vm2243 = vcmp.lt.s32.totalorder %v2173, 80
          %vm2244 = vmand %vm2242, %vm2243
          %2245 = vst.msk [vmem:[#allocation2] sm:$0x1] %vm2244, %v2240
          %v2246 = vcombine.high %v2231, %v2231
          %v2248 = vunpack.c.l.s4 1966171168
          %v2249 = vunpack.c.0.s8 %v2248
          %v2250 = vlaneseq
          %v2251 = vshrl.u32 %v2250, 7
          %v2252 = vsub.s32 %v2249, %v2251
          %v2253 = vrot.slane %v2246, %v2252
          %2254 = vrot.lane.b32.xlu0 %v2253, 80
          %v2255 = vpop.permute.xlu0 %2254
          %vm2257 = vcmp.ge.s32.totalorder %v2173, 80
          %vm2258 = vcmp.lt.s32.totalorder %v2173, 96
          %vm2259 = vmand %vm2257, %vm2258
          %2260 = vst.msk [vmem:[#allocation2] sm:$0x1] %vm2259, %v2255
          %v2261 = vcombine.high %v2238, %v2238
          %2262 = vrot.lane.b32.xlu0 %v2261, 96
          %v2263 = vpop.permute.xlu0 %2262
          %vm2265 = vcmp.ge.s32.totalorder %v2173, 96
          %vm2266 = vcmp.lt.s32.totalorder %v2173, 112
          %vm2267 = vmand %vm2265, %vm2266
          %2268 = vst.msk [vmem:[#allocation2] sm:$0x1] %vm2267, %v2263
          %v2269 = vcombine.high %v2253, %v2253
          %2270 = vrot.lane.b32.xlu0 %v2269, 112
          %v2271 = vpop.permute.xlu0 %2270
          %vm2273 = vcmp.ge.s32.totalorder %v2173, 112
          %vm2274 = vcmp.lt.s32.totalorder %v2173, 128
          %vm2275 = vmand %vm2273, %vm2274
          %2276 = vst.msk [vmem:[#allocation2] sm:$0x1] %vm2275, %v2271
          %2277 = vst.msk [vmem:[#allocation2 + $0x1] sm:$0x1] %vm2176, %v2172
          %v2280 = vunpack.c.l.s4 1966171168
          %v2281 = vunpack.c.0.s8 %v2280
          %v2282 = vlaneseq
          %v2283 = vshrl.u32 %v2282, 7
          %v2284 = vsub.s32 %v2281, %v2283
          %v2285 = vrot.slane %v2172, %v2284
          %v2286 = vcombine.high %v2285, %v2285
          %v2288 = vunpack.c.l.s4 1966171168
          %v2289 = vunpack.c.0.s8 %v2288
          %v2290 = vlaneseq
          %v2291 = vshrl.u32 %v2290, 7
          %v2292 = vsub.s32 %v2289, %v2291
          %v2293 = vrot.slane %v2285, %v2292
          %v2295 = vunpack.c.l.s4 1966171168
          %v2296 = vunpack.c.0.s8 %v2295
          %v2297 = vlaneseq
          %v2298 = vshrl.u32 %v2297, 7
          %v2299 = vsub.s32 %v2296, %v2298
          %v2300 = vrot.slane %v2286, %v2299
          %2301 = vrot.lane.b32.xlu0 %v2300, 16
          %v2302 = vpop.permute.xlu0 %2301
          %2304 = vst.msk [vmem:[#allocation2 + $0x1] sm:$0x1] %vm2206, %v2302
          %v2305 = vcombine.high %v2293, %v2293
          %2306 = vrot.lane.b32.xlu0 %v2305, 32
          %v2307 = vpop.permute.xlu0 %2306
          %2309 = vst.msk [vmem:[#allocation2 + $0x1] sm:$0x1] %vm2214, %v2307
          %v2310 = vcombine.high %v2300, %v2300
          %2311 = vrot.lane.b32.xlu0 %v2310, 48
          %v2312 = vpop.permute.xlu0 %2311
          %2314 = vst.msk [vmem:[#allocation2 + $0x1] sm:$0x1] %vm2222, %v2312
          %v2315 = vcombine.high %v2172, %v2172
          %v2317 = vunpack.c.l.s4 1966171168
          %v2318 = vunpack.c.0.s8 %v2317
          %v2319 = vlaneseq
          %v2320 = vshrl.u32 %v2319, 7
          %v2321 = vsub.s32 %v2318, %v2320
          %v2322 = vrot.slane %v2315, %v2321
          %v2324 = vunpack.c.l.s4 1966171168
          %v2325 = vunpack.c.0.s8 %v2324
          %v2326 = vlaneseq
          %v2327 = vshrl.u32 %v2326, 7
          %v2328 = vsub.s32 %v2325, %v2327
          %v2329 = vrot.slane %v2322, %v2328
          %2330 = vrot.lane.b32.xlu0 %v2329, 64
          %v2331 = vpop.permute.xlu0 %2330
          %2333 = vst.msk [vmem:[#allocation2 + $0x1] sm:$0x1] %vm2244, %v2331
          %v2334 = vcombine.high %v2322, %v2322
          %v2336 = vunpack.c.l.s4 1966171168
          %v2337 = vunpack.c.0.s8 %v2336
          %v2338 = vlaneseq
          %v2339 = vshrl.u32 %v2338, 7
          %v2340 = vsub.s32 %v2337, %v2339
          %v2341 = vrot.slane %v2334, %v2340
          %2342 = vrot.lane.b32.xlu0 %v2341, 80
          %v2343 = vpop.permute.xlu0 %2342
          %2345 = vst.msk [vmem:[#allocation2 + $0x1] sm:$0x1] %vm2259, %v2343
          %v2346 = vcombine.high %v2329, %v2329
          %2347 = vrot.lane.b32.xlu0 %v2346, 96
          %v2348 = vpop.permute.xlu0 %2347
          %2350 = vst.msk [vmem:[#allocation2 + $0x1] sm:$0x1] %vm2267, %v2348
          %v2351 = vcombine.high %v2341, %v2341
          %2352 = vrot.lane.b32.xlu0 %v2351, 112
          %v2353 = vpop.permute.xlu0 %2352
          %2355 = vst.msk [vmem:[#allocation2 + $0x1] sm:$0x1] %vm2275, %v2353
        $region60: #{tpu_custom_call.1} parent=51 // pred_fallthru
          _
        %v2356 = vld [vmem:[%s344] sm:$0xff]
        %v2357 = vld [vmem:[%s344 + $0x8] sm:$0xff]
        %v2358 = vld [vmem:[%s344 + $0x10] sm:$0xff]
        %v2359 = vld [vmem:[%s344 + $0x18] sm:$0xff]
        %v2360 = vld [vmem:[%s344 + $0x20] sm:$0xff]
        %v2361 = vld [vmem:[%s344 + $0x28] sm:$0xff]
        %v2362 = vld [vmem:[%s344 + $0x30] sm:$0xff]
        %v2363 = vld [vmem:[%s344 + $0x38] sm:$0xff]
        %v2364 = vld [vmem:[%s402] sm:$0xff]
        %v2365 = vld [vmem:[%s402 + $0x8] sm:$0xff]
        %v2366 = vld [vmem:[%s402 + $0x10] sm:$0xff]
        %v2367 = vld [vmem:[%s402 + $0x18] sm:$0xff]
        %2369 = vset.pattern.permute.xlu0 0
        %2370 = vperm.xlu0 %2369, %v2364
        %v2371 = vpop.permute.xlu0 %2370
        %2374 = vset.pattern.permute.xlu0 0
        %2375 = vperm.xlu0 %2374, %v2365
        %v2376 = vpop.permute.xlu0 %2375
        %2379 = vset.pattern.permute.xlu0 0
        %2380 = vperm.xlu0 %2379, %v2366
        %v2381 = vpop.permute.xlu0 %2380
        %2384 = vset.pattern.permute.xlu0 0
        %2385 = vperm.xlu0 %2384, %v2367
        %v2386 = vpop.permute.xlu0 %2385
        %v2388 = vmul.f32 %v2356, %v2371
        %v2389 = vmul.f32 %v2357, %v2371
        %v2390 = vmul.f32 %v2358, %v2376
        %v2391 = vmul.f32 %v2359, %v2376
        %v2392 = vmul.f32 %v2360, %v2381
        %v2393 = vmul.f32 %v2361, %v2381
        %v2394 = vmul.f32 %v2362, %v2386
        %v2395 = vmul.f32 %v2363, %v2386
        %v2396 = vld [vmem:[%s408] sm:$0xff]
        %v2397 = vld [vmem:[%s408 + $0x8] sm:$0xff]
        %v2398 = vld [vmem:[%s408 + $0x10] sm:$0xff]
        %v2399 = vld [vmem:[%s408 + $0x18] sm:$0xff]
        %2401 = vset.pattern.permute.xlu0 0
        %2402 = vperm.xlu0 %2401, %v2396
        %v2403 = vpop.permute.xlu0 %2402
        %2406 = vset.pattern.permute.xlu0 0
        %2407 = vperm.xlu0 %2406, %v2397
        %v2408 = vpop.permute.xlu0 %2407
        %2411 = vset.pattern.permute.xlu0 0
        %2412 = vperm.xlu0 %2411, %v2398
        %v2413 = vpop.permute.xlu0 %2412
        %2416 = vset.pattern.permute.xlu0 0
        %2417 = vperm.xlu0 %2416, %v2399
        %v2418 = vpop.permute.xlu0 %2417
        %v2420 = vadd.f32 %v2388, %v2403
        %v2421 = vadd.f32 %v2389, %v2403
        %v2422 = vadd.f32 %v2390, %v2408
        %v2423 = vadd.f32 %v2391, %v2408
        %v2424 = vadd.f32 %v2392, %v2413
        %v2425 = vadd.f32 %v2393, %v2413
        %v2426 = vadd.f32 %v2394, %v2418
        %v2427 = vadd.f32 %v2395, %v2418
        %v2428 = vmax.f32 %v2420, 0.0
        %v2429 = vmax.f32 %v2421, 0.0
        %v2430 = vmax.f32 %v2422, 0.0
        %v2431 = vmax.f32 %v2423, 0.0
        %v2432 = vmax.f32 %v2424, 0.0
        %v2433 = vmax.f32 %v2425, 0.0
        %v2434 = vmax.f32 %v2426, 0.0
        %v2435 = vmax.f32 %v2427, 0.0
        %v2436 = vld [vmem:[#allocation2] sm:$0x3]
        %v2438 = vlaneseq
        %v2439 = vshrl.u32 %v2438, 7
        %v2440 = vsub.s32 0, %v2439
        %v2441 = vrot.slane %v2436, %v2440
        %v2442 = vlaneseq
        %v2443 = vshrl.u32 %v2442, 7
        %v2444 = vsub.s32 1, %v2443
        %v2445 = vrot.slane %v2436, %v2444
        %v2448 = vmul.f32 %v2428, %v2441
        %v2449 = vmul.f32 %v2429, %v2445
        %v2450 = vmul.f32 %v2430, %v2441
        %v2451 = vmul.f32 %v2431, %v2445
        %v2452 = vmul.f32 %v2432, %v2441
        %v2453 = vmul.f32 %v2433, %v2445
        %v2454 = vmul.f32 %v2434, %v2441
        %v2455 = vmul.f32 %v2435, %v2445
        %2456 = vst [vmem:[%s391] sm:$0xff] %v2448
        %2457 = vst [vmem:[%s391 + $0x8] sm:$0xff] %v2449
        %2458 = vst [vmem:[%s391 + $0x10] sm:$0xff] %v2450
        %2459 = vst [vmem:[%s391 + $0x18] sm:$0xff] %v2451
        %2460 = vst [vmem:[%s391 + $0x20] sm:$0xff] %v2452
        %2461 = vst [vmem:[%s391 + $0x28] sm:$0xff] %v2453
        %2462 = vst [vmem:[%s391 + $0x30] sm:$0xff] %v2454
        %2463 = vst [vmem:[%s391 + $0x38] sm:$0xff] %v2455
        %s2464 = sand.u32 %s239, 1
        %s2465 = scalar_lea.sflag [#allocation6], %s2464
        %s2466 = sand.u32 %s239, 1
        %s2467 = smul.addr %s2466, 64
        %s2468 = scalar_lea.vmem [#allocation7], %s2467
        // Predicated region
        $region61: #{tpu_custom_call.1} parent=51 // pred_check
          %p2469 = pneg %p249
        $region62: #{tpu_custom_call.1} parent=51 // pred_check_branch
          %2471 = sbr.rel (%p2469) target = $region64
        $region63: #{tpu_custom_call.1} parent=51 // pred_region
          %s2472 = smul.u32 4, %s32
          %s2474 = ssub.s32 1024, 1024
          %2475 = vsyncadd %s2465, %s2474
          %s2476 = smul.addr %s2472, 2
          %s2477 = smul.addr %s31, 16
          %s2478 = sadd.s32 %s2476, %s2477
          %s2479 = smul.addr %s2478, 128
          %s2480 = scalar_lea.hbm %s8, %s2479
          %s2481 = sshll.u32 %s2468, 4
          %s2482 = int_to_ptr.vmem [resolvable:$true] %s2481
          %2487 = dma.vmem_to_hbm [thread:$0]  %s2482, 1024, %s2480, %s2465, 256, 256, 16
        $region64: #{tpu_custom_call.1} parent=51 // pred_fallthru
          _
      $region52: #{tpu_custom_call.1} parent=5 // pred_fallthru
        _
      %p2488 = scmp.le.s32.totalorder 2, %s22
      // Predicated region
      $region65: #{tpu_custom_call.1} parent=5 // pred_check
        %p2489 = pneg %p2488
      $region66: #{tpu_custom_call.1} parent=5 // pred_check_branch
        %2491 = sbr.rel (%p2489) target = $region68
      $region67: #{tpu_custom_call.1} parent=5 // pred_region
        %s2492 = ssub.s32 %s22, 2
        // Predicated region
        $region69: #{tpu_custom_call.1} parent=67 // pred_check
          %p2493 = pneg %p255
        $region70: #{tpu_custom_call.1} parent=67 // pred_check_branch
          %2495 = sbr.rel (%p2493) target = $region72
        $region71: #{tpu_custom_call.1} parent=67 // pred_region
          %s2496 = sand.u32 %s240, 1
          %s2497 = scalar_lea.sflag [#allocation6], %s2496
          %s2498 = sand.u32 %s240, 1
          %s2499 = smul.addr %s2498, 64
          %s2500 = scalar_lea.vmem [#allocation7], %s2499
          %2501 = dma.done %s2497, 1024
        $region72: #{tpu_custom_call.1} parent=67 // pred_fallthru
          _
      $region68: #{tpu_custom_call.1} parent=5 // pred_fallthru
        _
    $region6: #{tpu_custom_call.1} parent=1 // loop_footer
      %s26 = sadd.s32 1, %s22
    $region7: #{tpu_custom_call.1} parent=1 // loop_footer_branch
      %21 = sbr.rel target = $region3
    $region8: #{tpu_custom_call.1} parent=1 // loop_exit
      _
    %2502 = vsyncpa [#allocation5], 1
    %s2503 = scalar_lea.sflag [#allocation5], 1
    %2504 = vsyncpa %s2503, 1
    %2505 = vsyncpa [#allocation6], 1
    %s2506 = scalar_lea.sflag [#allocation6], 1
    %2507 = vsyncpa %s2506, 1

</llo_original>
